<compile_context>
chip_gen: v7x
topology: tpu7x:2x2x1
jax: 0.10.0
libtpu: 0.0.40
codegen_flags: <defaults>
</compile_context>

<pallas_src>
import functools

import jax
import jax.numpy as jnp
from jax import lax
from jax.experimental import pallas as pl
from jax.experimental.pallas import tpu as pltpu


def _layer_norm(x, gamma, beta, eps=1e-5):
    # PyTorch nn.LayerNorm: biased variance over the last dim, eps inside rsqrt.
    mean = jnp.mean(x, axis=-1, keepdims=True)
    var = jnp.mean((x - mean) ** 2, axis=-1, keepdims=True)
    return (x - mean) * lax.rsqrt(var + eps) * gamma + beta


def _erf(x):
    # Abramowitz & Stegun 7.1.26, |error| < 1.5e-7 -- matches nn.GELU's exact-erf form to well
    # below bf16 noise, built only from exp / mul / add / div / select (guaranteed lowerings).
    a1, a2, a3, a4, a5 = 0.254829592, -0.284496736, 1.421413741, -1.453152027, 1.061405429
    p = 0.3275911
    sgn = jnp.where(x >= 0.0, 1.0, -1.0)
    ax = jnp.abs(x)
    t = 1.0 / (1.0 + p * ax)
    poly = ((((a5 * t + a4) * t + a3) * t + a2) * t + a1) * t
    return sgn * (1.0 - poly * jnp.exp(-(ax * ax)))


def _gelu_exact(x):
    # nn.GELU() default = exact erf formulation.
    return 0.5 * x * (1.0 + _erf(x * 0.7071067811865476))


def bert_layer_kernel(num_heads, head_dim, heads_per_group, tq,
                      x_ref, mask_ref,
                      wqkv_ref, bqkv_ref,
                      wo_ref, bo_ref, g1_ref, be1_ref,
                      w1_ref, b1_ref, w2_ref, b2_ref, g2_ref, be2_ref,
                      out_ref, qkv_sc, cat_sc):
    S, H = x_ref.shape[1], x_ref.shape[2]
    gw = heads_per_group * head_dim
    num_groups = num_heads // heads_per_group
    nq = S // tq

    # Fused QKV projection: one (S,H)@(H,3H) bf16 matmul (f32 accumulation); bias-add and cast
    # straight into a bf16 VMEM scratch. head_dim**-0.5 scaling is folded into Wq/bq upstream.
    qkv_sc[...] = (jnp.dot(x_ref[0].astype(jnp.bfloat16), wqkv_ref[...],
                           preferred_element_type=jnp.float32)
                   + bqkv_ref[...]).astype(jnp.bfloat16)

    mask = mask_ref[0]                                   # (1, S) additive mask

    @pl.loop(0, nq)
    def _(qi):
        q_off = pl.multiple_of(qi * tq, tq)
        x_chunk = x_ref[0, pl.ds(q_off, tq), :]          # (tq, H) f32 residual input
        mask_b = jnp.broadcast_to(mask, (tq, S))         # hoisted: one broadcast per chunk

        # ---- attention: heads processed in lane-dense column groups -------------------
        for g in range(num_groups):
            lo = g * gw
            qg = qkv_sc[pl.ds(q_off, tq), lo:lo + gw]            # (tq, gw) bf16
            kg = qkv_sc[:, H + lo:H + lo + gw]                   # (S, gw)  bf16
            vg = qkv_sc[:, 2 * H + lo:2 * H + lo + gw]           # (S, gw)  bf16
            outs = []
            for hh in range(heads_per_group):
                a = hh * head_dim
                qh = qg[:, a:a + head_dim]
                kh = kg[:, a:a + head_dim]
                vh = vg[:, a:a + head_dim]
                # Contract last dims of q and k directly (no kh.T / XLU transpose).
                s = lax.dot_general(qh, kh, (((1,), (1,)), ((), ())),
                                    preferred_element_type=jnp.float32)
                s = s + mask_b
                s = s - jnp.max(s, axis=-1, keepdims=True)
                pr = jnp.exp(s)
                pr = pr * pl.reciprocal(jnp.sum(pr, axis=-1, keepdims=True), approx=True)
                # TODO(synk): attention dropout omitted (inference semantics).
                outs.append(jnp.dot(pr.astype(jnp.bfloat16), vh,
                                    preferred_element_type=jnp.float32))
            slab = outs[0] if len(outs) == 1 else jnp.concatenate(outs, axis=-1)
            cat_sc[:, lo:lo + gw] = slab.astype(jnp.bfloat16)    # lane-dense slab store

        # ---- output projection + residual + LayerNorm 1 (f32) -------------------------
        attn = jnp.dot(cat_sc[...], wo_ref[...],
                       preferred_element_type=jnp.float32) + bo_ref[...]
        res1 = _layer_norm(x_chunk + attn, g1_ref[...], be1_ref[...])

        # ---- FeedForward: full-K contraction per row chunk (no F-chunk accumulator) ----
        hmid = jnp.dot(res1.astype(jnp.bfloat16), w1_ref[...],
                       preferred_element_type=jnp.float32) + b1_ref[...]
        hmid = _gelu_exact(hmid)                         # matches nn.GELU (exact erf)
        ffn = jnp.dot(hmid.astype(jnp.bfloat16), w2_ref[...],
                      preferred_element_type=jnp.float32) + b2_ref[...]
        # TODO(synk): hidden dropout omitted (inference semantics).

        # ---- residual + LayerNorm 2, row-dense store to the output block --------------
        out = _layer_norm(res1 + ffn, g2_ref[...], be2_ref[...])
        out_ref[0, pl.ds(q_off, tq), :] = out.astype(out_ref.dtype)


def _pick_chunk(S, target):
    if S <= target:
        return S
    for cand in (512, 256, 128, 64, 32, 16, 8):
        if cand <= target and S % cand == 0:
            return cand
    return S


def bert_layer(x, attn_mask, params, num_heads):
    """x: (B, S, H) float32, attn_mask: (B, S) additive mask (float32)."""
    (wq, bq, wk, bk, wv, bv, wo, bo, g1, be1, w1, b1, w2, b2, g2, be2) = params
    B, S, H = x.shape
    head_dim = H // num_heads
    F = w1.shape[1]
    scaling = head_dim ** (-0.5)

    # Fold attention scaling into the Q projection and fuse Q/K/V weights; cast all matmul
    # weights to bf16 (biases / norm params stay f32 for accumulation).
    wqkv = jnp.concatenate([wq * scaling, wk, wv], axis=1).astype(jnp.bfloat16)
    bqkv = jnp.concatenate([bq * scaling, bk, bv], axis=1).astype(jnp.float32)
    wo_b = wo.astype(jnp.bfloat16)
    w1_b = w1.astype(jnp.bfloat16)
    w2_b = w2.astype(jnp.bfloat16)

    mask3 = attn_mask.reshape(B, 1, S).astype(jnp.float32)

    # Physical VMEM (v5e/v6e: 128 MiB, v7x: 64 MiB) drives tile sizing and the VMEM limit.
    try:
        vmem_cap = int(pltpu.get_tpu_info().vmem_capacity_bytes)
    except Exception:
        vmem_cap = 64 << 20
    tq = _pick_chunk(S, 128 if vmem_cap <= (64 << 20) else 256)

    # Lane-dense head grouping: target 128-lane column slabs (e.g. 2 heads when head_dim=64).
    heads_per_group = 1
    for cand in (8, 4, 2):
        if num_heads % cand == 0 and cand * head_dim <= 128:
            heads_per_group = cand
            break

    def const_spec(shape):
        # Grid-invariant block (weights/biases/norm params): single-buffer it -- default
        # double-buffering would double the weight VMEM for zero benefit.
        return pl.BlockSpec(shape, lambda b: (0, 0), pipeline_mode=pl.Buffered(1))

    in_specs = [
        pl.BlockSpec((1, S, H), lambda b: (b, 0, 0)),    # x
        pl.BlockSpec((1, 1, S), lambda b: (b, 0, 0)),    # additive mask
        const_spec((H, 3 * H)), const_spec((1, 3 * H)),  # wqkv, bqkv
        const_spec((H, H)), const_spec((1, H)),          # wo, bo
        const_spec((1, H)), const_spec((1, H)),          # gamma1, beta1
        const_spec((H, F)), const_spec((1, F)),          # w1, b1
        const_spec((F, H)), const_spec((1, H)),          # w2, b2
        const_spec((1, H)), const_spec((1, H)),          # gamma2, beta2
    ]

    # VMEM budget: 1x-buffered bf16 weights + small f32 params, 2x-buffered batch-varying
    # blocks (x / mask / out), scratches, and live per-chunk tiles. ~30% headroom, clamped to
    # ~85% of physical VMEM.
    weight_bytes = 2 * (H * 3 * H + H * H + H * F + F * H)
    small_bytes = 4 * (3 * H + 6 * H + F)
    io_bytes = 2 * 4 * (2 * S * H + S)                    # double-buffered x / out / mask
    scratch_bytes = 2 * (S * 3 * H + tq * H)              # bf16 qkv + per-chunk concat scratch
    live_bytes = 4 * (2 * tq * S + tq * F + 4 * tq * H)   # scores/probs + hmid + res1/attn/out
    vmem_needed = weight_bytes + small_bytes + io_bytes + scratch_bytes + live_bytes
    vmem_limit = int(min(int(vmem_cap * 0.85), max(32 << 20, int(vmem_needed * 1.3))))

    # TODO(synk): on v7x with B == 1 only one of the two TensorCores is used; a second "parallel"
    # grid axis over query chunks (with the QKV projection hoisted) would engage both.
    kernel = functools.partial(bert_layer_kernel, num_heads, head_dim, heads_per_group, tq)
    return pl.pallas_call(
        kernel,
        out_shape=jax.ShapeDtypeStruct((B, S, H), jnp.float32),
        grid=(B,),
        in_specs=in_specs,
        out_specs=pl.BlockSpec((1, S, H), lambda b: (b, 0, 0)),
        scratch_shapes=[pltpu.VMEM((S, 3 * H), jnp.bfloat16),   # bf16 qkv (q-scaling folded)
                        pltpu.VMEM((tq, H), jnp.bfloat16)],     # per-chunk head-concat slab
        compiler_params=pltpu.CompilerParams(
            dimension_semantics=("parallel",),
            vmem_limit_bytes=vmem_limit),
    )(x, mask3, wqkv, bqkv, wo_b, bo, g1, be1, w1_b, b1, w2_b, b2, g2, be2)


if __name__ == "__main__":
    B, S, H, NUM_HEADS = 2, 8, 32, 4
    F = 4 * H

    key = jax.random.PRNGKey(0)
    ks = jax.random.split(key, 8)

    def make_linear(k, fan_in, fan_out):
        # Deterministic init mimicking nn.Linear (uniform +/- 1/sqrt(fan_in));
        # weight returned already transposed to (in, out).
        kw, kb = jax.random.split(k)
        bound = 1.0 / (fan_in ** 0.5)
        w = jax.random.uniform(kw, (fan_in, fan_out), jnp.float32, -bound, bound)
        b = jax.random.uniform(kb, (1, fan_out), jnp.float32, -bound, bound)
        return w, b

    wq, bq = make_linear(ks[0], H, H)
    wk, bk = make_linear(ks[1], H, H)
    wv, bv = make_linear(ks[2], H, H)
    wo, bo = make_linear(ks[3], H, H)
    w1, b1 = make_linear(ks[4], H, F)
    w2, b2 = make_linear(ks[5], F, H)
    g1 = jnp.ones((1, H), jnp.float32); be1 = jnp.zeros((1, H), jnp.float32)
    g2 = jnp.ones((1, H), jnp.float32); be2 = jnp.zeros((1, H), jnp.float32)
    params = (wq, bq, wk, bk, wv, bv, wo, bo, g1, be1, w1, b1, w2, b2, g2, be2)

    x = jax.random.normal(ks[6], (B, S, H), jnp.float32)
    attn_mask = jnp.zeros((B, S), jnp.float32)   # additive mask; 0 = attend everywhere

    out = bert_layer(x, attn_mask, params, NUM_HEADS)
    jax.block_until_ready(out)
    assert out.shape == (B, S, H) and out.dtype == jnp.float32
    print("KERNEL_OK")
</pallas_src>

<mosaic_0001>
module attributes {stable_mosaic.version = 11 : i64} {
  func.func @bert_layer_kernel(%arg0: i32, %arg1: memref<1x8x32xf32, #tpu.memory_space<vmem>>, %arg2: memref<1x1x8xf32, #tpu.memory_space<vmem>>, %arg3: memref<32x96xbf16, #tpu.memory_space<vmem>>, %arg4: memref<1x96xf32, #tpu.memory_space<vmem>>, %arg5: memref<32x32xbf16, #tpu.memory_space<vmem>>, %arg6: memref<1x32xf32, #tpu.memory_space<vmem>>, %arg7: memref<1x32xf32, #tpu.memory_space<vmem>>, %arg8: memref<1x32xf32, #tpu.memory_space<vmem>>, %arg9: memref<32x128xbf16, #tpu.memory_space<vmem>>, %arg10: memref<1x128xf32, #tpu.memory_space<vmem>>, %arg11: memref<128x32xbf16, #tpu.memory_space<vmem>>, %arg12: memref<1x32xf32, #tpu.memory_space<vmem>>, %arg13: memref<1x32xf32, #tpu.memory_space<vmem>>, %arg14: memref<1x32xf32, #tpu.memory_space<vmem>>, %arg15: memref<1x8x32xf32, #tpu.memory_space<vmem>>, %arg16: memref<8x96xbf16, #tpu.memory_space<vmem>>, %arg17: memref<8x32xbf16, #tpu.memory_space<vmem>>) attributes {dimension_semantics = [#tpu.dimension_semantics<parallel>], iteration_bounds = array<i64: 2>, scalar_prefetch = 0 : i64, scratch_operands = 2 : i64, tpu.core_type = #tpu.core_type<tc>, window_params = [{transform_indices = @transform_0, window_bounds = array<i64: 1, 8, 32>}, {transform_indices = @transform_1, window_bounds = array<i64: 1, 1, 8>}, {pipeline_mode = #tpu.pipeline_mode<synchronous>, transform_indices = @transform_2, window_bounds = array<i64: 32, 96>}, {pipeline_mode = #tpu.pipeline_mode<synchronous>, transform_indices = @transform_3, window_bounds = array<i64: 1, 96>}, {pipeline_mode = #tpu.pipeline_mode<synchronous>, transform_indices = @transform_4, window_bounds = array<i64: 32, 32>}, {pipeline_mode = #tpu.pipeline_mode<synchronous>, transform_indices = @transform_5, window_bounds = array<i64: 1, 32>}, {pipeline_mode = #tpu.pipeline_mode<synchronous>, transform_indices = @transform_6, window_bounds = array<i64: 1, 32>}, {pipeline_mode = #tpu.pipeline_mode<synchronous>, transform_indices = @transform_7, window_bounds = array<i64: 1, 32>}, {pipeline_mode = #tpu.pipeline_mode<synchronous>, transform_indices = @transform_8, window_bounds = array<i64: 32, 128>}, {pipeline_mode = #tpu.pipeline_mode<synchronous>, transform_indices = @transform_9, window_bounds = array<i64: 1, 128>}, {pipeline_mode = #tpu.pipeline_mode<synchronous>, transform_indices = @transform_10, window_bounds = array<i64: 128, 32>}, {pipeline_mode = #tpu.pipeline_mode<synchronous>, transform_indices = @transform_11, window_bounds = array<i64: 1, 32>}, {pipeline_mode = #tpu.pipeline_mode<synchronous>, transform_indices = @transform_12, window_bounds = array<i64: 1, 32>}, {pipeline_mode = #tpu.pipeline_mode<synchronous>, transform_indices = @transform_13, window_bounds = array<i64: 1, 32>}, {transform_indices = @transform_14, window_bounds = array<i64: 1, 8, 32>}]} {
    %c0 = arith.constant 0 : index
    %c0_0 = arith.constant 0 : index
    %c0_1 = arith.constant 0 : index
    %0 = vector.load %arg1[%c0, %c0_0, %c0_1] : memref<1x8x32xf32, #tpu.memory_space<vmem>>, vector<1x8x32xf32>
    %1 = vector.shape_cast %0 : vector<1x8x32xf32> to vector<8x32xf32>
    %2 = arith.truncf %1 : vector<8x32xf32> to vector<8x32xbf16>
    %c0_2 = arith.constant 0 : index
    %c0_3 = arith.constant 0 : index
    %3 = vector.load %arg3[%c0_2, %c0_3] : memref<32x96xbf16, #tpu.memory_space<vmem>>, vector<32x96xbf16>
    %cst = arith.constant dense<0.000000e+00> : vector<8x96xf32>
    %4 = tpu.matmul %2, %3, %cst {dimension_numbers = #tpu.dot_dimension_numbers<[1], [0], [0], [1], [0, 0, 1, 1], [], []>} : vector<8x32xbf16>, vector<32x96xbf16>, vector<8x96xf32> -> vector<8x96xf32>
    %c0_4 = arith.constant 0 : index
    %c0_5 = arith.constant 0 : index
    %5 = vector.load %arg4[%c0_4, %c0_5] : memref<1x96xf32, #tpu.memory_space<vmem>>, vector<1x96xf32>
    %6 = vector.broadcast %5 : vector<1x96xf32> to vector<8x96xf32>
    %7 = arith.addf %4, %6 : vector<8x96xf32>
    %8 = arith.truncf %7 : vector<8x96xf32> to vector<8x96xbf16>
    %c0_6 = arith.constant 0 : index
    %c0_7 = arith.constant 0 : index
    %9 = vector.load %arg16[%c0_6, %c0_7] : memref<8x96xbf16, #tpu.memory_space<vmem>>, vector<8x96xbf16>
    tpu.vector_store %arg16[%c0_6, %c0_7], %8 {strides = array<i32>} : memref<8x96xbf16, #tpu.memory_space<vmem>>, vector<8x96xbf16>,
    %c0_8 = arith.constant 0 : index
    %c0_9 = arith.constant 0 : index
    %c0_10 = arith.constant 0 : index
    %10 = vector.load %arg2[%c0_8, %c0_9, %c0_10] : memref<1x1x8xf32, #tpu.memory_space<vmem>>, vector<1x1x8xf32>
    %11 = vector.shape_cast %10 : vector<1x1x8xf32> to vector<1x8xf32>
    %c0_i32 = arith.constant 0 : i32
    %c1_i32 = arith.constant 1 : i32
    %12 = arith.muli %c0_i32, %c1_i32 : i32
    %c0_i32_11 = arith.constant 0 : i32
    %13 = arith.addi %c0_i32_11, %12 : i32
    %c8_i32 = arith.constant 8 : i32
    %14 = arith.muli %13, %c8_i32 : i32
    %15 = tpu.assume_multiple %14, 8 : i32
    %c0_12 = arith.constant 0 : index
    %16 = arith.index_cast %15 : i32 to index
    %c0_13 = arith.constant 0 : index
    %17 = vector.load %arg1[%c0_12, %16, %c0_13] : memref<1x8x32xf32, #tpu.memory_space<vmem>>, vector<1x8x32xf32>
    %18 = vector.shape_cast %17 : vector<1x8x32xf32> to vector<8x32xf32>
    %19 = vector.shape_cast %11 : vector<1x8xf32> to vector<1x8xf32>
    %20 = vector.broadcast %19 : vector<1x8xf32> to vector<8x8xf32>
    %21 = arith.index_cast %15 : i32 to index
    %c0_14 = arith.constant 0 : index
    %22 = vector.load %arg16[%21, %c0_14] : memref<8x96xbf16, #tpu.memory_space<vmem>>, vector<8x32xbf16>
    %c0_15 = arith.constant 0 : index
    %c32 = arith.constant 32 : index
    %23 = vector.load %arg16[%c0_15, %c32] : memref<8x96xbf16, #tpu.memory_space<vmem>>, vector<8x32xbf16>
    %c0_16 = arith.constant 0 : index
    %c64 = arith.constant 64 : index
    %24 = vector.load %arg16[%c0_16, %c64] : memref<8x96xbf16, #tpu.memory_space<vmem>>, vector<8x32xbf16>
    %25 = vector.extract_strided_slice %22 {offsets = [0, 0], sizes = [8, 8], strides = [1, 1]} : vector<8x32xbf16> to vector<8x8xbf16>
    %26 = vector.extract_strided_slice %23 {offsets = [0, 0], sizes = [8, 8], strides = [1, 1]} : vector<8x32xbf16> to vector<8x8xbf16>
    %27 = vector.extract_strided_slice %24 {offsets = [0, 0], sizes = [8, 8], strides = [1, 1]} : vector<8x32xbf16> to vector<8x8xbf16>
    %cst_17 = arith.constant dense<0.000000e+00> : vector<8x8xf32>
    %28 = tpu.matmul %25, %26, %cst_17 {dimension_numbers = #tpu.dot_dimension_numbers<[1], [1], [0], [0], [0, 0, 1, 0], [], []>} : vector<8x8xbf16>, vector<8x8xbf16>, vector<8x8xf32> -> vector<8x8xf32>
    %29 = arith.addf %28, %20 : vector<8x8xf32>
    %cst_18 = arith.constant dense<0xFF800000> : vector<8xf32>
    %30 = vector.multi_reduction <maximumf>, %29, %cst_18 [1] : vector<8x8xf32> to vector<8xf32>
    %31 = vector.shape_cast %30 : vector<8xf32> to vector<8x1xf32>
    %32 = vector.broadcast %31 : vector<8x1xf32> to vector<8x8xf32>
    %33 = arith.subf %29, %32 : vector<8x8xf32>
    %34 = math.exp %33 : vector<8x8xf32>
    %cst_19 = arith.constant dense<0.000000e+00> : vector<8xf32>
    %35 = vector.multi_reduction <add>, %34, %cst_19 [1] : vector<8x8xf32> to vector<8xf32>
    %36 = vector.shape_cast %35 : vector<8xf32> to vector<8x1xf32>
    %37 = tpu.reciprocal %36 {approx = true} : vector<8x1xf32> -> vector<8x1xf32>
    %38 = vector.broadcast %37 : vector<8x1xf32> to vector<8x8xf32>
    %39 = arith.mulf %34, %38 : vector<8x8xf32>
    %40 = arith.truncf %39 : vector<8x8xf32> to vector<8x8xbf16>
    %cst_20 = arith.constant dense<0.000000e+00> : vector<8x8xf32>
    %41 = tpu.matmul %40, %27, %cst_20 {dimension_numbers = #tpu.dot_dimension_numbers<[1], [0], [0], [1], [0, 0, 1, 1], [], []>} : vector<8x8xbf16>, vector<8x8xbf16>, vector<8x8xf32> -> vector<8x8xf32>
    %42 = vector.extract_strided_slice %22 {offsets = [0, 8], sizes = [8, 8], strides = [1, 1]} : vector<8x32xbf16> to vector<8x8xbf16>
    %43 = vector.extract_strided_slice %23 {offsets = [0, 8], sizes = [8, 8], strides = [1, 1]} : vector<8x32xbf16> to vector<8x8xbf16>
    %44 = vector.extract_strided_slice %24 {offsets = [0, 8], sizes = [8, 8], strides = [1, 1]} : vector<8x32xbf16> to vector<8x8xbf16>
    %cst_21 = arith.constant dense<0.000000e+00> : vector<8x8xf32>
    %45 = tpu.matmul %42, %43, %cst_21 {dimension_numbers = #tpu.dot_dimension_numbers<[1], [1], [0], [0], [0, 0, 1, 0], [], []>} : vector<8x8xbf16>, vector<8x8xbf16>, vector<8x8xf32> -> vector<8x8xf32>
    %46 = arith.addf %45, %20 : vector<8x8xf32>
    %cst_22 = arith.constant dense<0xFF800000> : vector<8xf32>
    %47 = vector.multi_reduction <maximumf>, %46, %cst_22 [1] : vector<8x8xf32> to vector<8xf32>
    %48 = vector.shape_cast %47 : vector<8xf32> to vector<8x1xf32>
    %49 = vector.broadcast %48 : vector<8x1xf32> to vector<8x8xf32>
    %50 = arith.subf %46, %49 : vector<8x8xf32>
    %51 = math.exp %50 : vector<8x8xf32>
    %cst_23 = arith.constant dense<0.000000e+00> : vector<8xf32>
    %52 = vector.multi_reduction <add>, %51, %cst_23 [1] : vector<8x8xf32> to vector<8xf32>
    %53 = vector.shape_cast %52 : vector<8xf32> to vector<8x1xf32>
    %54 = tpu.reciprocal %53 {approx = true} : vector<8x1xf32> -> vector<8x1xf32>
    %55 = vector.broadcast %54 : vector<8x1xf32> to vector<8x8xf32>
    %56 = arith.mulf %51, %55 : vector<8x8xf32>
    %57 = arith.truncf %56 : vector<8x8xf32> to vector<8x8xbf16>
    %cst_24 = arith.constant dense<0.000000e+00> : vector<8x8xf32>
    %58 = tpu.matmul %57, %44, %cst_24 {dimension_numbers = #tpu.dot_dimension_numbers<[1], [0], [0], [1], [0, 0, 1, 1], [], []>} : vector<8x8xbf16>, vector<8x8xbf16>, vector<8x8xf32> -> vector<8x8xf32>
    %59 = vector.extract_strided_slice %22 {offsets = [0, 16], sizes = [8, 8], strides = [1, 1]} : vector<8x32xbf16> to vector<8x8xbf16>
    %60 = vector.extract_strided_slice %23 {offsets = [0, 16], sizes = [8, 8], strides = [1, 1]} : vector<8x32xbf16> to vector<8x8xbf16>
    %61 = vector.extract_strided_slice %24 {offsets = [0, 16], sizes = [8, 8], strides = [1, 1]} : vector<8x32xbf16> to vector<8x8xbf16>
    %cst_25 = arith.constant dense<0.000000e+00> : vector<8x8xf32>
    %62 = tpu.matmul %59, %60, %cst_25 {dimension_numbers = #tpu.dot_dimension_numbers<[1], [1], [0], [0], [0, 0, 1, 0], [], []>} : vector<8x8xbf16>, vector<8x8xbf16>, vector<8x8xf32> -> vector<8x8xf32>
    %63 = arith.addf %62, %20 : vector<8x8xf32>
    %cst_26 = arith.constant dense<0xFF800000> : vector<8xf32>
    %64 = vector.multi_reduction <maximumf>, %63, %cst_26 [1] : vector<8x8xf32> to vector<8xf32>
    %65 = vector.shape_cast %64 : vector<8xf32> to vector<8x1xf32>
    %66 = vector.broadcast %65 : vector<8x1xf32> to vector<8x8xf32>
    %67 = arith.subf %63, %66 : vector<8x8xf32>
    %68 = math.exp %67 : vector<8x8xf32>
    %cst_27 = arith.constant dense<0.000000e+00> : vector<8xf32>
    %69 = vector.multi_reduction <add>, %68, %cst_27 [1] : vector<8x8xf32> to vector<8xf32>
    %70 = vector.shape_cast %69 : vector<8xf32> to vector<8x1xf32>
    %71 = tpu.reciprocal %70 {approx = true} : vector<8x1xf32> -> vector<8x1xf32>
    %72 = vector.broadcast %71 : vector<8x1xf32> to vector<8x8xf32>
    %73 = arith.mulf %68, %72 : vector<8x8xf32>
    %74 = arith.truncf %73 : vector<8x8xf32> to vector<8x8xbf16>
    %cst_28 = arith.constant dense<0.000000e+00> : vector<8x8xf32>
    %75 = tpu.matmul %74, %61, %cst_28 {dimension_numbers = #tpu.dot_dimension_numbers<[1], [0], [0], [1], [0, 0, 1, 1], [], []>} : vector<8x8xbf16>, vector<8x8xbf16>, vector<8x8xf32> -> vector<8x8xf32>
    %76 = vector.extract_strided_slice %22 {offsets = [0, 24], sizes = [8, 8], strides = [1, 1]} : vector<8x32xbf16> to vector<8x8xbf16>
    %77 = vector.extract_strided_slice %23 {offsets = [0, 24], sizes = [8, 8], strides = [1, 1]} : vector<8x32xbf16> to vector<8x8xbf16>
    %78 = vector.extract_strided_slice %24 {offsets = [0, 24], sizes = [8, 8], strides = [1, 1]} : vector<8x32xbf16> to vector<8x8xbf16>
    %cst_29 = arith.constant dense<0.000000e+00> : vector<8x8xf32>
    %79 = tpu.matmul %76, %77, %cst_29 {dimension_numbers = #tpu.dot_dimension_numbers<[1], [1], [0], [0], [0, 0, 1, 0], [], []>} : vector<8x8xbf16>, vector<8x8xbf16>, vector<8x8xf32> -> vector<8x8xf32>
    %80 = arith.addf %79, %20 : vector<8x8xf32>
    %cst_30 = arith.constant dense<0xFF800000> : vector<8xf32>
    %81 = vector.multi_reduction <maximumf>, %80, %cst_30 [1] : vector<8x8xf32> to vector<8xf32>
    %82 = vector.shape_cast %81 : vector<8xf32> to vector<8x1xf32>
    %83 = vector.broadcast %82 : vector<8x1xf32> to vector<8x8xf32>
    %84 = arith.subf %80, %83 : vector<8x8xf32>
    %85 = math.exp %84 : vector<8x8xf32>
    %cst_31 = arith.constant dense<0.000000e+00> : vector<8xf32>
    %86 = vector.multi_reduction <add>, %85, %cst_31 [1] : vector<8x8xf32> to vector<8xf32>
    %87 = vector.shape_cast %86 : vector<8xf32> to vector<8x1xf32>
    %88 = tpu.reciprocal %87 {approx = true} : vector<8x1xf32> -> vector<8x1xf32>
    %89 = vector.broadcast %88 : vector<8x1xf32> to vector<8x8xf32>
    %90 = arith.mulf %85, %89 : vector<8x8xf32>
    %91 = arith.truncf %90 : vector<8x8xf32> to vector<8x8xbf16>
    %cst_32 = arith.constant dense<0.000000e+00> : vector<8x8xf32>
    %92 = tpu.matmul %91, %78, %cst_32 {dimension_numbers = #tpu.dot_dimension_numbers<[1], [0], [0], [1], [0, 0, 1, 1], [], []>} : vector<8x8xbf16>, vector<8x8xbf16>, vector<8x8xf32> -> vector<8x8xf32>
    %93 = tpu.concatenate %41, %58, %75, %92 in 1 : vector<8x8xf32>, vector<8x8xf32>, vector<8x8xf32>, vector<8x8xf32> -> vector<8x32xf32>
    %94 = arith.truncf %93 : vector<8x32xf32> to vector<8x32xbf16>
    %c0_33 = arith.constant 0 : index
    %c0_34 = arith.constant 0 : index
    %95 = vector.load %arg17[%c0_33, %c0_34] : memref<8x32xbf16, #tpu.memory_space<vmem>>, vector<8x32xbf16>
    tpu.vector_store %arg17[%c0_33, %c0_34], %94 {strides = array<i32>} : memref<8x32xbf16, #tpu.memory_space<vmem>>, vector<8x32xbf16>,
    %c0_35 = arith.constant 0 : index
    %c0_36 = arith.constant 0 : index
    %96 = vector.load %arg17[%c0_35, %c0_36] : memref<8x32xbf16, #tpu.memory_space<vmem>>, vector<8x32xbf16>
    %c0_37 = arith.constant 0 : index
    %c0_38 = arith.constant 0 : index
    %97 = vector.load %arg5[%c0_37, %c0_38] : memref<32x32xbf16, #tpu.memory_space<vmem>>, vector<32x32xbf16>
    %cst_39 = arith.constant dense<0.000000e+00> : vector<8x32xf32>
    %98 = tpu.matmul %96, %97, %cst_39 {dimension_numbers = #tpu.dot_dimension_numbers<[1], [0], [0], [1], [0, 0, 1, 1], [], []>} : vector<8x32xbf16>, vector<32x32xbf16>, vector<8x32xf32> -> vector<8x32xf32>
    %c0_40 = arith.constant 0 : index
    %c0_41 = arith.constant 0 : index
    %99 = vector.load %arg6[%c0_40, %c0_41] : memref<1x32xf32, #tpu.memory_space<vmem>>, vector<1x32xf32>
    %100 = vector.broadcast %99 : vector<1x32xf32> to vector<8x32xf32>
    %101 = arith.addf %98, %100 : vector<8x32xf32>
    %102 = arith.addf %18, %101 : vector<8x32xf32>
    %c0_42 = arith.constant 0 : index
    %c0_43 = arith.constant 0 : index
    %103 = vector.load %arg7[%c0_42, %c0_43] : memref<1x32xf32, #tpu.memory_space<vmem>>, vector<1x32xf32>
    %c0_44 = arith.constant 0 : index
    %c0_45 = arith.constant 0 : index
    %104 = vector.load %arg8[%c0_44, %c0_45] : memref<1x32xf32, #tpu.memory_space<vmem>>, vector<1x32xf32>
    %cst_46 = arith.constant dense<0.000000e+00> : vector<8xf32>
    %105 = vector.multi_reduction <add>, %102, %cst_46 [1] : vector<8x32xf32> to vector<8xf32>
    %106 = vector.shape_cast %105 : vector<8xf32> to vector<8x1xf32>
    %cst_47 = arith.constant 3.200000e+01 : f32
    %107 = vector.broadcast %cst_47 : f32 to vector<8x1xf32>
    %108 = arith.divf %106, %107 : vector<8x1xf32>
    %109 = vector.broadcast %108 : vector<8x1xf32> to vector<8x32xf32>
    %110 = arith.subf %102, %109 : vector<8x32xf32>
    %111 = arith.mulf %110, %110 : vector<8x32xf32>
    %cst_48 = arith.constant dense<0.000000e+00> : vector<8xf32>
    %112 = vector.multi_reduction <add>, %111, %cst_48 [1] : vector<8x32xf32> to vector<8xf32>
    %113 = vector.shape_cast %112 : vector<8xf32> to vector<8x1xf32>
    %cst_49 = arith.constant 3.200000e+01 : f32
    %114 = vector.broadcast %cst_49 : f32 to vector<8x1xf32>
    %115 = arith.divf %113, %114 : vector<8x1xf32>
    %116 = vector.broadcast %108 : vector<8x1xf32> to vector<8x32xf32>
    %117 = arith.subf %102, %116 : vector<8x32xf32>
    %cst_50 = arith.constant 9.99999974E-6 : f32
    %118 = vector.broadcast %cst_50 : f32 to vector<8x1xf32>
    %119 = arith.addf %115, %118 : vector<8x1xf32>
    %120 = math.rsqrt %119 : vector<8x1xf32>
    %121 = vector.broadcast %120 : vector<8x1xf32> to vector<8x32xf32>
    %122 = arith.mulf %117, %121 : vector<8x32xf32>
    %123 = vector.broadcast %103 : vector<1x32xf32> to vector<8x32xf32>
    %124 = arith.mulf %122, %123 : vector<8x32xf32>
    %125 = vector.broadcast %104 : vector<1x32xf32> to vector<8x32xf32>
    %126 = arith.addf %124, %125 : vector<8x32xf32>
    %127 = arith.truncf %126 : vector<8x32xf32> to vector<8x32xbf16>
    %c0_51 = arith.constant 0 : index
    %c0_52 = arith.constant 0 : index
    %128 = vector.load %arg9[%c0_51, %c0_52] : memref<32x128xbf16, #tpu.memory_space<vmem>>, vector<32x128xbf16>
    %cst_53 = arith.constant dense<0.000000e+00> : vector<8x128xf32>
    %129 = tpu.matmul %127, %128, %cst_53 {dimension_numbers = #tpu.dot_dimension_numbers<[1], [0], [0], [1], [0, 0, 1, 1], [], []>} : vector<8x32xbf16>, vector<32x128xbf16>, vector<8x128xf32> -> vector<8x128xf32>
    %c0_54 = arith.constant 0 : index
    %c0_55 = arith.constant 0 : index
    %130 = vector.load %arg10[%c0_54, %c0_55] : memref<1x128xf32, #tpu.memory_space<vmem>>, vector<1x128xf32>
    %131 = vector.broadcast %130 : vector<1x128xf32> to vector<8x128xf32>
    %132 = arith.addf %129, %131 : vector<8x128xf32>
    %cst_56 = arith.constant 5.000000e-01 : f32
    %133 = vector.broadcast %cst_56 : f32 to vector<8x128xf32>
    %134 = arith.mulf %133, %132 : vector<8x128xf32>
    %cst_57 = arith.constant 0.707106769 : f32
    %135 = vector.broadcast %cst_57 : f32 to vector<8x128xf32>
    %136 = arith.mulf %132, %135 : vector<8x128xf32>
    %cst_58 = arith.constant 0.000000e+00 : f32
    %137 = vector.broadcast %cst_58 : f32 to vector<8x128xf32>
    %138 = arith.cmpf oge, %136, %137 : vector<8x128xf32>
    %cst_59 = arith.constant 1.000000e+00 : f32
    %cst_60 = arith.constant -1.000000e+00 : f32
    %139 = vector.broadcast %cst_59 : f32 to vector<8x128xf32>
    %140 = vector.broadcast %cst_60 : f32 to vector<8x128xf32>
    %141 = arith.select %138, %139, %140 : vector<8x128xi1>, vector<8x128xf32>
    %142 = math.absf %136 : vector<8x128xf32>
    %cst_61 = arith.constant 0.327591091 : f32
    %143 = vector.broadcast %cst_61 : f32 to vector<8x128xf32>
    %144 = arith.mulf %143, %142 : vector<8x128xf32>
    %cst_62 = arith.constant 1.000000e+00 : f32
    %145 = vector.broadcast %cst_62 : f32 to vector<8x128xf32>
    %146 = arith.addf %145, %144 : vector<8x128xf32>
    %cst_63 = arith.constant 1.000000e+00 : f32
    %147 = vector.broadcast %cst_63 : f32 to vector<8x128xf32>
    %148 = arith.divf %147, %146 : vector<8x128xf32>
    %cst_64 = arith.constant 1.06140542 : f32
    %149 = vector.broadcast %cst_64 : f32 to vector<8x128xf32>
    %150 = arith.mulf %149, %148 : vector<8x128xf32>
    %cst_65 = arith.constant -1.45315206 : f32
    %151 = vector.broadcast %cst_65 : f32 to vector<8x128xf32>
    %152 = arith.addf %150, %151 : vector<8x128xf32>
    %153 = arith.mulf %152, %148 : vector<8x128xf32>
    %cst_66 = arith.constant 1.42141378 : f32
    %154 = vector.broadcast %cst_66 : f32 to vector<8x128xf32>
    %155 = arith.addf %153, %154 : vector<8x128xf32>
    %156 = arith.mulf %155, %148 : vector<8x128xf32>
    %cst_67 = arith.constant -0.284496725 : f32
    %157 = vector.broadcast %cst_67 : f32 to vector<8x128xf32>
    %158 = arith.addf %156, %157 : vector<8x128xf32>
    %159 = arith.mulf %158, %148 : vector<8x128xf32>
    %cst_68 = arith.constant 0.254829586 : f32
    %160 = vector.broadcast %cst_68 : f32 to vector<8x128xf32>
    %161 = arith.addf %159, %160 : vector<8x128xf32>
    %162 = arith.mulf %161, %148 : vector<8x128xf32>
    %163 = arith.mulf %142, %142 : vector<8x128xf32>
    %cst_69 = arith.constant 0.000000e+00 : f32
    %164 = vector.broadcast %cst_69 : f32 to vector<8x128xf32>
    %165 = arith.subf %164, %163 : vector<8x128xf32>
    %166 = math.exp %165 : vector<8x128xf32>
    %167 = arith.mulf %162, %166 : vector<8x128xf32>
    %cst_70 = arith.constant 1.000000e+00 : f32
    %168 = vector.broadcast %cst_70 : f32 to vector<8x128xf32>
    %169 = arith.subf %168, %167 : vector<8x128xf32>
    %170 = arith.mulf %141, %169 : vector<8x128xf32>
    %cst_71 = arith.constant 1.000000e+00 : f32
    %171 = vector.broadcast %cst_71 : f32 to vector<8x128xf32>
    %172 = arith.addf %171, %170 : vector<8x128xf32>
    %173 = arith.mulf %134, %172 : vector<8x128xf32>
    %174 = arith.truncf %173 : vector<8x128xf32> to vector<8x128xbf16>
    %c0_72 = arith.constant 0 : index
    %c0_73 = arith.constant 0 : index
    %175 = vector.load %arg11[%c0_72, %c0_73] : memref<128x32xbf16, #tpu.memory_space<vmem>>, vector<128x32xbf16>
    %cst_74 = arith.constant dense<0.000000e+00> : vector<8x32xf32>
    %176 = tpu.matmul %174, %175, %cst_74 {dimension_numbers = #tpu.dot_dimension_numbers<[1], [0], [0], [1], [0, 0, 1, 1], [], []>} : vector<8x128xbf16>, vector<128x32xbf16>, vector<8x32xf32> -> vector<8x32xf32>
    %c0_75 = arith.constant 0 : index
    %c0_76 = arith.constant 0 : index
    %177 = vector.load %arg12[%c0_75, %c0_76] : memref<1x32xf32, #tpu.memory_space<vmem>>, vector<1x32xf32>
    %178 = vector.broadcast %177 : vector<1x32xf32> to vector<8x32xf32>
    %179 = arith.addf %176, %178 : vector<8x32xf32>
    %180 = arith.addf %126, %179 : vector<8x32xf32>
    %c0_77 = arith.constant 0 : index
    %c0_78 = arith.constant 0 : index
    %181 = vector.load %arg13[%c0_77, %c0_78] : memref<1x32xf32, #tpu.memory_space<vmem>>, vector<1x32xf32>
    %c0_79 = arith.constant 0 : index
    %c0_80 = arith.constant 0 : index
    %182 = vector.load %arg14[%c0_79, %c0_80] : memref<1x32xf32, #tpu.memory_space<vmem>>, vector<1x32xf32>
    %cst_81 = arith.constant dense<0.000000e+00> : vector<8xf32>
    %183 = vector.multi_reduction <add>, %180, %cst_81 [1] : vector<8x32xf32> to vector<8xf32>
    %184 = vector.shape_cast %183 : vector<8xf32> to vector<8x1xf32>
    %cst_82 = arith.constant 3.200000e+01 : f32
    %185 = vector.broadcast %cst_82 : f32 to vector<8x1xf32>
    %186 = arith.divf %184, %185 : vector<8x1xf32>
    %187 = vector.broadcast %186 : vector<8x1xf32> to vector<8x32xf32>
    %188 = arith.subf %180, %187 : vector<8x32xf32>
    %189 = arith.mulf %188, %188 : vector<8x32xf32>
    %cst_83 = arith.constant dense<0.000000e+00> : vector<8xf32>
    %190 = vector.multi_reduction <add>, %189, %cst_83 [1] : vector<8x32xf32> to vector<8xf32>
    %191 = vector.shape_cast %190 : vector<8xf32> to vector<8x1xf32>
    %cst_84 = arith.constant 3.200000e+01 : f32
    %192 = vector.broadcast %cst_84 : f32 to vector<8x1xf32>
    %193 = arith.divf %191, %192 : vector<8x1xf32>
    %194 = vector.broadcast %186 : vector<8x1xf32> to vector<8x32xf32>
    %195 = arith.subf %180, %194 : vector<8x32xf32>
    %cst_85 = arith.constant 9.99999974E-6 : f32
    %196 = vector.broadcast %cst_85 : f32 to vector<8x1xf32>
    %197 = arith.addf %193, %196 : vector<8x1xf32>
    %198 = math.rsqrt %197 : vector<8x1xf32>
    %199 = vector.broadcast %198 : vector<8x1xf32> to vector<8x32xf32>
    %200 = arith.mulf %195, %199 : vector<8x32xf32>
    %201 = vector.broadcast %181 : vector<1x32xf32> to vector<8x32xf32>
    %202 = arith.mulf %200, %201 : vector<8x32xf32>
    %203 = vector.broadcast %182 : vector<1x32xf32> to vector<8x32xf32>
    %204 = arith.addf %202, %203 : vector<8x32xf32>
    %c0_86 = arith.constant 0 : index
    %205 = arith.index_cast %15 : i32 to index
    %c0_87 = arith.constant 0 : index
    %206 = vector.load %arg15[%c0_86, %205, %c0_87] : memref<1x8x32xf32, #tpu.memory_space<vmem>>, vector<1x8x32xf32>
    %207 = vector.shape_cast %206 : vector<1x8x32xf32> to vector<8x32xf32>
    %208 = vector.shape_cast %204 : vector<8x32xf32> to vector<1x8x32xf32>
    tpu.vector_store %arg15[%c0_86, %205, %c0_87], %208 {strides = array<i32>} : memref<1x8x32xf32, #tpu.memory_space<vmem>>, vector<1x8x32xf32>,
    %c1_i32_88 = arith.constant 1 : i32
    return
  }
  func.func @transform_0(%arg0: i32) -> (i32, i32, i32) {
    %c0_i32 = arith.constant 0 : i32
    %c0_i32_0 = arith.constant 0 : i32
    %c0_i32_1 = arith.constant 0 : i32
    return %arg0, %c0_i32, %c0_i32_0 : i32, i32, i32
  }
  func.func @transform_1(%arg0: i32) -> (i32, i32, i32) {
    %c0_i32 = arith.constant 0 : i32
    %c0_i32_0 = arith.constant 0 : i32
    %c0_i32_1 = arith.constant 0 : i32
    return %arg0, %c0_i32, %c0_i32_0 : i32, i32, i32
  }
  func.func @transform_2(%arg0: i32) -> (i32, i32) {
    %c0_i32 = arith.constant 0 : i32
    %c0_i32_0 = arith.constant 0 : i32
    %c0_i32_1 = arith.constant 0 : i32
    return %c0_i32, %c0_i32_0 : i32, i32
  }
  func.func @transform_3(%arg0: i32) -> (i32, i32) {
    %c0_i32 = arith.constant 0 : i32
    %c0_i32_0 = arith.constant 0 : i32
    %c0_i32_1 = arith.constant 0 : i32
    return %c0_i32, %c0_i32_0 : i32, i32
  }
  func.func @transform_4(%arg0: i32) -> (i32, i32) {
    %c0_i32 = arith.constant 0 : i32
    %c0_i32_0 = arith.constant 0 : i32
    %c0_i32_1 = arith.constant 0 : i32
    return %c0_i32, %c0_i32_0 : i32, i32
  }
  func.func @transform_5(%arg0: i32) -> (i32, i32) {
    %c0_i32 = arith.constant 0 : i32
    %c0_i32_0 = arith.constant 0 : i32
    %c0_i32_1 = arith.constant 0 : i32
    return %c0_i32, %c0_i32_0 : i32, i32
  }
  func.func @transform_6(%arg0: i32) -> (i32, i32) {
    %c0_i32 = arith.constant 0 : i32
    %c0_i32_0 = arith.constant 0 : i32
    %c0_i32_1 = arith.constant 0 : i32
    return %c0_i32, %c0_i32_0 : i32, i32
  }
  func.func @transform_7(%arg0: i32) -> (i32, i32) {
    %c0_i32 = arith.constant 0 : i32
    %c0_i32_0 = arith.constant 0 : i32
    %c0_i32_1 = arith.constant 0 : i32
    return %c0_i32, %c0_i32_0 : i32, i32
  }
  func.func @transform_8(%arg0: i32) -> (i32, i32) {
    %c0_i32 = arith.constant 0 : i32
    %c0_i32_0 = arith.constant 0 : i32
    %c0_i32_1 = arith.constant 0 : i32
    return %c0_i32, %c0_i32_0 : i32, i32
  }
  func.func @transform_9(%arg0: i32) -> (i32, i32) {
    %c0_i32 = arith.constant 0 : i32
    %c0_i32_0 = arith.constant 0 : i32
    %c0_i32_1 = arith.constant 0 : i32
    return %c0_i32, %c0_i32_0 : i32, i32
  }
  func.func @transform_10(%arg0: i32) -> (i32, i32) {
    %c0_i32 = arith.constant 0 : i32
    %c0_i32_0 = arith.constant 0 : i32
    %c0_i32_1 = arith.constant 0 : i32
    return %c0_i32, %c0_i32_0 : i32, i32
  }
  func.func @transform_11(%arg0: i32) -> (i32, i32) {
    %c0_i32 = arith.constant 0 : i32
    %c0_i32_0 = arith.constant 0 : i32
    %c0_i32_1 = arith.constant 0 : i32
    return %c0_i32, %c0_i32_0 : i32, i32
  }
  func.func @transform_12(%arg0: i32) -> (i32, i32) {
    %c0_i32 = arith.constant 0 : i32
    %c0_i32_0 = arith.constant 0 : i32
    %c0_i32_1 = arith.constant 0 : i32
    return %c0_i32, %c0_i32_0 : i32, i32
  }
  func.func @transform_13(%arg0: i32) -> (i32, i32) {
    %c0_i32 = arith.constant 0 : i32
    %c0_i32_0 = arith.constant 0 : i32
    %c0_i32_1 = arith.constant 0 : i32
    return %c0_i32, %c0_i32_0 : i32, i32
  }
  func.func @transform_14(%arg0: i32) -> (i32, i32, i32) {
    %c0_i32 = arith.constant 0 : i32
    %c0_i32_0 = arith.constant 0 : i32
    %c0_i32_1 = arith.constant 0 : i32
    return %arg0, %c0_i32, %c0_i32_0 : i32, i32, i32
  }
}

</mosaic_0001>

<llo_original>
// kernel: tpu_custom_call.1
$region0: #{tpu_custom_call.1}
  #allocation0 [shape = 'u32[]', space=smem, size = 0x4, offset = 0x4, fixed_abs, tag = 'smem constant byte address 0x4 - core index']
  #allocation1 [shape = 'u32[144,128]{1,0:T(1,128)}', space=vmem, size = 0x12000, scoped, tag = 'internal scratch']
  #allocation2 [shape = 'bf16[8,96]{1,0:T(8,128)(2,1)}', space=vmem, size = 0x800, scoped, tag = 'scratch operand']
  #allocation3 [shape = 'bf16[8,32]{1,0:T(8,128)(2,1)}', space=vmem, size = 0x800, scoped, tag = 'scratch operand']
  %s0 = inlined_call_operand.vmem [shape: f32[2,8,32], index: 0, kind: input, shape index: {}]
  %s1 = inlined_call_operand.vmem [shape: f32[2,1,8], index: 1, kind: input, shape index: {}]
  %s2 = inlined_call_operand.vmem [shape: bf16[32,96], index: 2, kind: input, shape index: {}]
  %s3 = inlined_call_operand.vmem [shape: f32[1,96], index: 3, kind: input, shape index: {}]
  %s4 = inlined_call_operand.vmem [shape: bf16[32,32], index: 4, kind: input, shape index: {}]
  %s5 = inlined_call_operand.vmem [shape: f32[1,32], index: 5, kind: input, shape index: {}]
  %s6 = inlined_call_operand.vmem [shape: f32[1,32], index: 6, kind: input, shape index: {}]
  %s7 = inlined_call_operand.vmem [shape: f32[1,32], index: 7, kind: input, shape index: {}]
  %s8 = inlined_call_operand.vmem [shape: bf16[32,128], index: 8, kind: input, shape index: {}]
  %s9 = inlined_call_operand.vmem [shape: f32[1,128], index: 9, kind: input, shape index: {}]
  %s10 = inlined_call_operand.vmem [shape: bf16[128,32], index: 10, kind: input, shape index: {}]
  %s11 = inlined_call_operand.vmem [shape: f32[1,32], index: 11, kind: input, shape index: {}]
  %s12 = inlined_call_operand.vmem [shape: f32[1,32], index: 12, kind: input, shape index: {}]
  %s13 = inlined_call_operand.vmem [shape: f32[1,32], index: 13, kind: input, shape index: {}]
  %s14 = inlined_call_operand.hbm [shape: f32[2,8,32], index: 14, kind: output, shape index: {}]
  %s15 = sld [smem:[#allocation0]]
  $region89: #{tpu_custom_call.1} parent=0
    _
  %s17 = ssub.s32 1, %s15
  %s18 = scalar_select 0, %s17, %s15
  $region1: #{tpu_custom_call.1} parent=0
    #allocation4 [shape = 'u8[8192]{0}', space=vmem, size = 0x2000, scoped, tag = 'output window, operand 0']
    #allocation5 [shape = 's32[2]{0}', space=sflag, size = 0x8, scoped, tag = 'scoped memory for tpu_custom_call.1']
    %19 = vsyncpa [#allocation5], 0
    %s20 = scalar_lea.sflag [#allocation5], 1
    %21 = vsyncpa %s20, 0
    loop: start=0, step=1, limit=4
    $region2: #{tpu_custom_call.1} parent=1 // loop_pre_header
      _
    $region3: #{tpu_custom_call.1} parent=1 // loop_header
      %s23 = sphi 0, %s27
      %p24 = scmp.ge.s32.totalorder %s23, 4
      %s33 = sphi 0, %s35
      %s36 = sphi 0, %s33
      %s37 = sphi 0, %s36
      %s53 = sphi 0, %s37
      %s59 = sphi 0, %s61
      %s62 = sphi 0, %s59
      %s63 = sphi 0, %s62
      %s79 = sphi 0, %s63
      %s83 = sphi 0, %s83
      %s85 = sphi 0, %s83
      %s86 = sphi 0, %s85
      %s100 = sphi 0, %s86
      %s104 = sphi 0, %s104
      %s106 = sphi 0, %s104
      %s107 = sphi 0, %s106
      %s121 = sphi 0, %s107
      %s125 = sphi 0, %s125
      %s127 = sphi 0, %s125
      %s128 = sphi 0, %s127
      %s142 = sphi 0, %s128
      %s146 = sphi 0, %s146
      %s148 = sphi 0, %s146
      %s149 = sphi 0, %s148
      %s163 = sphi 0, %s149
      %s167 = sphi 0, %s167
      %s169 = sphi 0, %s167
      %s170 = sphi 0, %s169
      %s184 = sphi 0, %s170
      %s188 = sphi 0, %s188
      %s190 = sphi 0, %s188
      %s191 = sphi 0, %s190
      %s205 = sphi 0, %s191
      %s209 = sphi 0, %s209
      %s211 = sphi 0, %s209
      %s212 = sphi 0, %s211
      %s226 = sphi 0, %s212
      %s230 = sphi 0, %s230
      %s232 = sphi 0, %s230
      %s233 = sphi 0, %s232
      %s247 = sphi 0, %s233
      %s251 = sphi 0, %s251
      %s253 = sphi 0, %s251
      %s254 = sphi 0, %s253
      %s268 = sphi 0, %s254
      %s272 = sphi 0, %s272
      %s274 = sphi 0, %s272
      %s275 = sphi 0, %s274
      %s289 = sphi 0, %s275
      %s293 = sphi 0, %s293
      %s295 = sphi 0, %s293
      %s296 = sphi 0, %s295
      %s310 = sphi 0, %s296
      %s314 = sphi 0, %s314
      %s316 = sphi 0, %s314
      %s317 = sphi 0, %s316
      %s331 = sphi 0, %s317
      %s337 = sphi 0, %s339
      %s340 = sphi 0, %s337
      %s341 = sphi 0, %s340
      %s357 = sphi 0, %s341
    $region4: #{tpu_custom_call.1} parent=1 // loop_header_branch
      %26 = sbr.rel (%p24) target = $region8
    $region5: #{tpu_custom_call.1} parent=1 // loop_body
      %s28 = ssub.s32 %s23, 1
      %s29 = ssub.s32 %s23, 2
      %s30 = sadd.s32 %s23, 1
      %s31 = ssub.s32 %s23, %s30
      %p32 = scmp.eq.s32.totalorder %s31, 0
      %s34 = sadd.s32 %s33, 1
      %s35 = scalar_select %p32, %s33, %s34
      %p38 = pneg %p32
      %p39 = scmp.eq.s32.totalorder %s23, 1
      %p40 = por %p38, %p39
      %p41 = scmp.ne.s32.totalorder %s33, %s36
      %p42 = scmp.eq.s32.totalorder %s23, 0
      %p43 = por %p41, %p42
      %p44 = scmp.ne.s32.totalorder %s33, %s36
      %p45 = scmp.eq.s32.totalorder %s28, 1
      %p46 = por %p44, %p45
      %p47 = scmp.ne.s32.totalorder %s36, %s37
      %p48 = scmp.eq.s32.totalorder %s28, 0
      %p49 = por %p47, %p48
      %p50 = scmp.ne.s32.totalorder %s36, %s37
      %p51 = scmp.eq.s32.totalorder %s29, 1
      %p52 = por %p50, %p51
      %p54 = scmp.ne.s32.totalorder %s37, %s53
      %p55 = scmp.eq.s32.totalorder %s29, 0
      %p56 = por %p54, %p55
      %s57 = ssub.s32 %s23, %s30
      %p58 = scmp.eq.s32.totalorder %s57, 0
      %s60 = sadd.s32 %s59, 1
      %s61 = scalar_select %p58, %s59, %s60
      %p64 = pneg %p58
      %p65 = scmp.eq.s32.totalorder %s23, 1
      %p66 = por %p64, %p65
      %p67 = scmp.ne.s32.totalorder %s59, %s62
      %p68 = scmp.eq.s32.totalorder %s23, 0
      %p69 = por %p67, %p68
      %p70 = scmp.ne.s32.totalorder %s59, %s62
      %p71 = scmp.eq.s32.totalorder %s28, 1
      %p72 = por %p70, %p71
      %p73 = scmp.ne.s32.totalorder %s62, %s63
      %p74 = scmp.eq.s32.totalorder %s28, 0
      %p75 = por %p73, %p74
      %p76 = scmp.ne.s32.totalorder %s62, %s63
      %p77 = scmp.eq.s32.totalorder %s29, 1
      %p78 = por %p76, %p77
      %p80 = scmp.ne.s32.totalorder %s63, %s79
      %p81 = scmp.eq.s32.totalorder %s29, 0
      %p82 = por %p80, %p81
      %s84 = sadd.s32 %s83, 1
      %p87 = scmp.eq.s32.totalorder %s23, 1
      %p88 = scmp.ne.s32.totalorder %s83, %s85
      %p89 = scmp.eq.s32.totalorder %s23, 0
      %p90 = por %p88, %p89
      %p91 = scmp.ne.s32.totalorder %s83, %s85
      %p92 = scmp.eq.s32.totalorder %s28, 1
      %p93 = por %p91, %p92
      %p94 = scmp.ne.s32.totalorder %s85, %s86
      %p95 = scmp.eq.s32.totalorder %s28, 0
      %p96 = por %p94, %p95
      %p97 = scmp.ne.s32.totalorder %s85, %s86
      %p98 = scmp.eq.s32.totalorder %s29, 1
      %p99 = por %p97, %p98
      %p101 = scmp.ne.s32.totalorder %s86, %s100
      %p102 = scmp.eq.s32.totalorder %s29, 0
      %p103 = por %p101, %p102
      %s105 = sadd.s32 %s104, 1
      %p108 = scmp.eq.s32.totalorder %s23, 1
      %p109 = scmp.ne.s32.totalorder %s104, %s106
      %p110 = scmp.eq.s32.totalorder %s23, 0
      %p111 = por %p109, %p110
      %p112 = scmp.ne.s32.totalorder %s104, %s106
      %p113 = scmp.eq.s32.totalorder %s28, 1
      %p114 = por %p112, %p113
      %p115 = scmp.ne.s32.totalorder %s106, %s107
      %p116 = scmp.eq.s32.totalorder %s28, 0
      %p117 = por %p115, %p116
      %p118 = scmp.ne.s32.totalorder %s106, %s107
      %p119 = scmp.eq.s32.totalorder %s29, 1
      %p120 = por %p118, %p119
      %p122 = scmp.ne.s32.totalorder %s107, %s121
      %p123 = scmp.eq.s32.totalorder %s29, 0
      %p124 = por %p122, %p123
      %s126 = sadd.s32 %s125, 1
      %p129 = scmp.eq.s32.totalorder %s23, 1
      %p130 = scmp.ne.s32.totalorder %s125, %s127
      %p131 = scmp.eq.s32.totalorder %s23, 0
      %p132 = por %p130, %p131
      %p133 = scmp.ne.s32.totalorder %s125, %s127
      %p134 = scmp.eq.s32.totalorder %s28, 1
      %p135 = por %p133, %p134
      %p136 = scmp.ne.s32.totalorder %s127, %s128
      %p137 = scmp.eq.s32.totalorder %s28, 0
      %p138 = por %p136, %p137
      %p139 = scmp.ne.s32.totalorder %s127, %s128
      %p140 = scmp.eq.s32.totalorder %s29, 1
      %p141 = por %p139, %p140
      %p143 = scmp.ne.s32.totalorder %s128, %s142
      %p144 = scmp.eq.s32.totalorder %s29, 0
      %p145 = por %p143, %p144
      %s147 = sadd.s32 %s146, 1
      %p150 = scmp.eq.s32.totalorder %s23, 1
      %p151 = scmp.ne.s32.totalorder %s146, %s148
      %p152 = scmp.eq.s32.totalorder %s23, 0
      %p153 = por %p151, %p152
      %p154 = scmp.ne.s32.totalorder %s146, %s148
      %p155 = scmp.eq.s32.totalorder %s28, 1
      %p156 = por %p154, %p155
      %p157 = scmp.ne.s32.totalorder %s148, %s149
      %p158 = scmp.eq.s32.totalorder %s28, 0
      %p159 = por %p157, %p158
      %p160 = scmp.ne.s32.totalorder %s148, %s149
      %p161 = scmp.eq.s32.totalorder %s29, 1
      %p162 = por %p160, %p161
      %p164 = scmp.ne.s32.totalorder %s149, %s163
      %p165 = scmp.eq.s32.totalorder %s29, 0
      %p166 = por %p164, %p165
      %s168 = sadd.s32 %s167, 1
      %p171 = scmp.eq.s32.totalorder %s23, 1
      %p172 = scmp.ne.s32.totalorder %s167, %s169
      %p173 = scmp.eq.s32.totalorder %s23, 0
      %p174 = por %p172, %p173
      %p175 = scmp.ne.s32.totalorder %s167, %s169
      %p176 = scmp.eq.s32.totalorder %s28, 1
      %p177 = por %p175, %p176
      %p178 = scmp.ne.s32.totalorder %s169, %s170
      %p179 = scmp.eq.s32.totalorder %s28, 0
      %p180 = por %p178, %p179
      %p181 = scmp.ne.s32.totalorder %s169, %s170
      %p182 = scmp.eq.s32.totalorder %s29, 1
      %p183 = por %p181, %p182
      %p185 = scmp.ne.s32.totalorder %s170, %s184
      %p186 = scmp.eq.s32.totalorder %s29, 0
      %p187 = por %p185, %p186
      %s189 = sadd.s32 %s188, 1
      %p192 = scmp.eq.s32.totalorder %s23, 1
      %p193 = scmp.ne.s32.totalorder %s188, %s190
      %p194 = scmp.eq.s32.totalorder %s23, 0
      %p195 = por %p193, %p194
      %p196 = scmp.ne.s32.totalorder %s188, %s190
      %p197 = scmp.eq.s32.totalorder %s28, 1
      %p198 = por %p196, %p197
      %p199 = scmp.ne.s32.totalorder %s190, %s191
      %p200 = scmp.eq.s32.totalorder %s28, 0
      %p201 = por %p199, %p200
      %p202 = scmp.ne.s32.totalorder %s190, %s191
      %p203 = scmp.eq.s32.totalorder %s29, 1
      %p204 = por %p202, %p203
      %p206 = scmp.ne.s32.totalorder %s191, %s205
      %p207 = scmp.eq.s32.totalorder %s29, 0
      %p208 = por %p206, %p207
      %s210 = sadd.s32 %s209, 1
      %p213 = scmp.eq.s32.totalorder %s23, 1
      %p214 = scmp.ne.s32.totalorder %s209, %s211
      %p215 = scmp.eq.s32.totalorder %s23, 0
      %p216 = por %p214, %p215
      %p217 = scmp.ne.s32.totalorder %s209, %s211
      %p218 = scmp.eq.s32.totalorder %s28, 1
      %p219 = por %p217, %p218
      %p220 = scmp.ne.s32.totalorder %s211, %s212
      %p221 = scmp.eq.s32.totalorder %s28, 0
      %p222 = por %p220, %p221
      %p223 = scmp.ne.s32.totalorder %s211, %s212
      %p224 = scmp.eq.s32.totalorder %s29, 1
      %p225 = por %p223, %p224
      %p227 = scmp.ne.s32.totalorder %s212, %s226
      %p228 = scmp.eq.s32.totalorder %s29, 0
      %p229 = por %p227, %p228
      %s231 = sadd.s32 %s230, 1
      %p234 = scmp.eq.s32.totalorder %s23, 1
      %p235 = scmp.ne.s32.totalorder %s230, %s232
      %p236 = scmp.eq.s32.totalorder %s23, 0
      %p237 = por %p235, %p236
      %p238 = scmp.ne.s32.totalorder %s230, %s232
      %p239 = scmp.eq.s32.totalorder %s28, 1
      %p240 = por %p238, %p239
      %p241 = scmp.ne.s32.totalorder %s232, %s233
      %p242 = scmp.eq.s32.totalorder %s28, 0
      %p243 = por %p241, %p242
      %p244 = scmp.ne.s32.totalorder %s232, %s233
      %p245 = scmp.eq.s32.totalorder %s29, 1
      %p246 = por %p244, %p245
      %p248 = scmp.ne.s32.totalorder %s233, %s247
      %p249 = scmp.eq.s32.totalorder %s29, 0
      %p250 = por %p248, %p249
      %s252 = sadd.s32 %s251, 1
      %p255 = scmp.eq.s32.totalorder %s23, 1
      %p256 = scmp.ne.s32.totalorder %s251, %s253
      %p257 = scmp.eq.s32.totalorder %s23, 0
      %p258 = por %p256, %p257
      %p259 = scmp.ne.s32.totalorder %s251, %s253
      %p260 = scmp.eq.s32.totalorder %s28, 1
      %p261 = por %p259, %p260
      %p262 = scmp.ne.s32.totalorder %s253, %s254
      %p263 = scmp.eq.s32.totalorder %s28, 0
      %p264 = por %p262, %p263
      %p265 = scmp.ne.s32.totalorder %s253, %s254
      %p266 = scmp.eq.s32.totalorder %s29, 1
      %p267 = por %p265, %p266
      %p269 = scmp.ne.s32.totalorder %s254, %s268
      %p270 = scmp.eq.s32.totalorder %s29, 0
      %p271 = por %p269, %p270
      %s273 = sadd.s32 %s272, 1
      %p276 = scmp.eq.s32.totalorder %s23, 1
      %p277 = scmp.ne.s32.totalorder %s272, %s274
      %p278 = scmp.eq.s32.totalorder %s23, 0
      %p279 = por %p277, %p278
      %p280 = scmp.ne.s32.totalorder %s272, %s274
      %p281 = scmp.eq.s32.totalorder %s28, 1
      %p282 = por %p280, %p281
      %p283 = scmp.ne.s32.totalorder %s274, %s275
      %p284 = scmp.eq.s32.totalorder %s28, 0
      %p285 = por %p283, %p284
      %p286 = scmp.ne.s32.totalorder %s274, %s275
      %p287 = scmp.eq.s32.totalorder %s29, 1
      %p288 = por %p286, %p287
      %p290 = scmp.ne.s32.totalorder %s275, %s289
      %p291 = scmp.eq.s32.totalorder %s29, 0
      %p292 = por %p290, %p291
      %s294 = sadd.s32 %s293, 1
      %p297 = scmp.eq.s32.totalorder %s23, 1
      %p298 = scmp.ne.s32.totalorder %s293, %s295
      %p299 = scmp.eq.s32.totalorder %s23, 0
      %p300 = por %p298, %p299
      %p301 = scmp.ne.s32.totalorder %s293, %s295
      %p302 = scmp.eq.s32.totalorder %s28, 1
      %p303 = por %p301, %p302
      %p304 = scmp.ne.s32.totalorder %s295, %s296
      %p305 = scmp.eq.s32.totalorder %s28, 0
      %p306 = por %p304, %p305
      %p307 = scmp.ne.s32.totalorder %s295, %s296
      %p308 = scmp.eq.s32.totalorder %s29, 1
      %p309 = por %p307, %p308
      %p311 = scmp.ne.s32.totalorder %s296, %s310
      %p312 = scmp.eq.s32.totalorder %s29, 0
      %p313 = por %p311, %p312
      %s315 = sadd.s32 %s314, 1
      %p318 = scmp.eq.s32.totalorder %s23, 1
      %p319 = scmp.ne.s32.totalorder %s314, %s316
      %p320 = scmp.eq.s32.totalorder %s23, 0
      %p321 = por %p319, %p320
      %p322 = scmp.ne.s32.totalorder %s314, %s316
      %p323 = scmp.eq.s32.totalorder %s28, 1
      %p324 = por %p322, %p323
      %p325 = scmp.ne.s32.totalorder %s316, %s317
      %p326 = scmp.eq.s32.totalorder %s28, 0
      %p327 = por %p325, %p326
      %p328 = scmp.ne.s32.totalorder %s316, %s317
      %p329 = scmp.eq.s32.totalorder %s29, 1
      %p330 = por %p328, %p329
      %p332 = scmp.ne.s32.totalorder %s317, %s331
      %p333 = scmp.eq.s32.totalorder %s29, 0
      %p334 = por %p332, %p333
      %s335 = ssub.s32 %s23, %s30
      %p336 = scmp.eq.s32.totalorder %s335, 0
      %s338 = sadd.s32 %s337, 1
      %s339 = scalar_select %p336, %s337, %s338
      %p342 = pneg %p336
      %p343 = scmp.eq.s32.totalorder %s23, 1
      %p344 = por %p342, %p343
      %p345 = scmp.ne.s32.totalorder %s337, %s340
      %p346 = scmp.eq.s32.totalorder %s23, 0
      %p347 = por %p345, %p346
      %p348 = scmp.ne.s32.totalorder %s337, %s340
      %p349 = scmp.eq.s32.totalorder %s28, 1
      %p350 = por %p348, %p349
      %p351 = scmp.ne.s32.totalorder %s340, %s341
      %p352 = scmp.eq.s32.totalorder %s28, 0
      %p353 = por %p351, %p352
      %p354 = scmp.ne.s32.totalorder %s340, %s341
      %p355 = scmp.eq.s32.totalorder %s29, 1
      %p356 = por %p354, %p355
      %p358 = scmp.ne.s32.totalorder %s341, %s357
      %p359 = scmp.eq.s32.totalorder %s29, 0
      %p360 = por %p358, %p359
      %p361 = scmp.le.s32.totalorder 1, %s23
      %p362 = scmp.lt.s32.totalorder %s23, 3
      %p363 = pnand %p361, %p362
      %p364 = pneg %p363
      // Predicated region
      $region9: #{tpu_custom_call.1} parent=5 // pred_check
        _
      $region10: #{tpu_custom_call.1} parent=5 // pred_check_branch
        %366 = sbr.rel (%p363) target = $region12
      $region11: #{tpu_custom_call.1} parent=5 // pred_region
        %s367 = ssub.s32 %s23, 1
        // Predicated region
        $region13: #{tpu_custom_call.1} parent=11 // pred_check
          %p368 = pneg %p96
        $region14: #{tpu_custom_call.1} parent=11 // pred_check_branch
          %370 = sbr.rel (%p368) target = $region16
        $region15: #{tpu_custom_call.1} parent=11 // pred_region
          _
        $region16: #{tpu_custom_call.1} parent=11 // pred_fallthru
          _
        // Predicated region
        $region17: #{tpu_custom_call.1} parent=11 // pred_check
          %p371 = pneg %p117
        $region18: #{tpu_custom_call.1} parent=11 // pred_check_branch
          %373 = sbr.rel (%p371) target = $region20
        $region19: #{tpu_custom_call.1} parent=11 // pred_region
          _
        $region20: #{tpu_custom_call.1} parent=11 // pred_fallthru
          _
        // Predicated region
        $region21: #{tpu_custom_call.1} parent=11 // pred_check
          %p374 = pneg %p138
        $region22: #{tpu_custom_call.1} parent=11 // pred_check_branch
          %376 = sbr.rel (%p374) target = $region24
        $region23: #{tpu_custom_call.1} parent=11 // pred_region
          _
        $region24: #{tpu_custom_call.1} parent=11 // pred_fallthru
          _
        // Predicated region
        $region25: #{tpu_custom_call.1} parent=11 // pred_check
          %p377 = pneg %p159
        $region26: #{tpu_custom_call.1} parent=11 // pred_check_branch
          %379 = sbr.rel (%p377) target = $region28
        $region27: #{tpu_custom_call.1} parent=11 // pred_region
          _
        $region28: #{tpu_custom_call.1} parent=11 // pred_fallthru
          _
        // Predicated region
        $region29: #{tpu_custom_call.1} parent=11 // pred_check
          %p380 = pneg %p180
        $region30: #{tpu_custom_call.1} parent=11 // pred_check_branch
          %382 = sbr.rel (%p380) target = $region32
        $region31: #{tpu_custom_call.1} parent=11 // pred_region
          _
        $region32: #{tpu_custom_call.1} parent=11 // pred_fallthru
          _
        // Predicated region
        $region33: #{tpu_custom_call.1} parent=11 // pred_check
          %p383 = pneg %p201
        $region34: #{tpu_custom_call.1} parent=11 // pred_check_branch
          %385 = sbr.rel (%p383) target = $region36
        $region35: #{tpu_custom_call.1} parent=11 // pred_region
          _
        $region36: #{tpu_custom_call.1} parent=11 // pred_fallthru
          _
        // Predicated region
        $region37: #{tpu_custom_call.1} parent=11 // pred_check
          %p386 = pneg %p222
        $region38: #{tpu_custom_call.1} parent=11 // pred_check_branch
          %388 = sbr.rel (%p386) target = $region40
        $region39: #{tpu_custom_call.1} parent=11 // pred_region
          _
        $region40: #{tpu_custom_call.1} parent=11 // pred_fallthru
          _
        // Predicated region
        $region41: #{tpu_custom_call.1} parent=11 // pred_check
          %p389 = pneg %p243
        $region42: #{tpu_custom_call.1} parent=11 // pred_check_branch
          %391 = sbr.rel (%p389) target = $region44
        $region43: #{tpu_custom_call.1} parent=11 // pred_region
          _
        $region44: #{tpu_custom_call.1} parent=11 // pred_fallthru
          _
        // Predicated region
        $region45: #{tpu_custom_call.1} parent=11 // pred_check
          %p392 = pneg %p264
        $region46: #{tpu_custom_call.1} parent=11 // pred_check_branch
          %394 = sbr.rel (%p392) target = $region48
        $region47: #{tpu_custom_call.1} parent=11 // pred_region
          _
        $region48: #{tpu_custom_call.1} parent=11 // pred_fallthru
          _
        // Predicated region
        $region49: #{tpu_custom_call.1} parent=11 // pred_check
          %p395 = pneg %p285
        $region50: #{tpu_custom_call.1} parent=11 // pred_check_branch
          %397 = sbr.rel (%p395) target = $region52
        $region51: #{tpu_custom_call.1} parent=11 // pred_region
          _
        $region52: #{tpu_custom_call.1} parent=11 // pred_fallthru
          _
        // Predicated region
        $region53: #{tpu_custom_call.1} parent=11 // pred_check
          %p398 = pneg %p306
        $region54: #{tpu_custom_call.1} parent=11 // pred_check_branch
          %400 = sbr.rel (%p398) target = $region56
        $region55: #{tpu_custom_call.1} parent=11 // pred_region
          _
        $region56: #{tpu_custom_call.1} parent=11 // pred_fallthru
          _
        // Predicated region
        $region57: #{tpu_custom_call.1} parent=11 // pred_check
          %p401 = pneg %p327
        $region58: #{tpu_custom_call.1} parent=11 // pred_check_branch
          %403 = sbr.rel (%p401) target = $region60
        $region59: #{tpu_custom_call.1} parent=11 // pred_region
          _
        $region60: #{tpu_custom_call.1} parent=11 // pred_fallthru
          _
      $region12: #{tpu_custom_call.1} parent=5 // pred_fallthru
        _
      %p404 = scmp.lt.s32.totalorder %s23, 2
      // Predicated region
      $region61: #{tpu_custom_call.1} parent=5 // pred_check
        %p405 = pneg %p404
      $region62: #{tpu_custom_call.1} parent=5 // pred_check_branch
        %407 = sbr.rel (%p405) target = $region64
      $region63: #{tpu_custom_call.1} parent=5 // pred_region
        // Predicated region
        $region65: #{tpu_custom_call.1} parent=63 // pred_check
          %p408 = pneg %p43
        $region66: #{tpu_custom_call.1} parent=63 // pred_check_branch
          %410 = sbr.rel (%p408) target = $region68
        $region67: #{tpu_custom_call.1} parent=63 // pred_region
          %p411 = scmp.lt.s32.totalorder %s23, 1
          %s412 = scalar_select %p411, %s23, 1
          %s413 = smul.addr %s412, 8
          %s414 = scalar_lea.vmem %s0, %s413
        $region68: #{tpu_custom_call.1} parent=63 // pred_fallthru
          _
        // Predicated region
        $region69: #{tpu_custom_call.1} parent=63 // pred_check
          %p415 = pneg %p69
        $region70: #{tpu_custom_call.1} parent=63 // pred_check_branch
          %417 = sbr.rel (%p415) target = $region72
        $region71: #{tpu_custom_call.1} parent=63 // pred_region
          %p418 = scmp.lt.s32.totalorder %s23, 1
          %s419 = scalar_select %p418, %s23, 1
          %s420 = scalar_lea.vmem %s1, %s419
        $region72: #{tpu_custom_call.1} parent=63 // pred_fallthru
          _
      $region64: #{tpu_custom_call.1} parent=5 // pred_fallthru
        _
      %p421 = scmp.le.s32.totalorder 1, %s23
      %p422 = scmp.lt.s32.totalorder %s23, 3
      %p423 = pnand %p421, %p422
      %p424 = pneg %p423
      // Predicated region
      $region73: #{tpu_custom_call.1} parent=5 // pred_check
        _
      $region74: #{tpu_custom_call.1} parent=5 // pred_check_branch
        %426 = sbr.rel (%p423) target = $region76
      $region75: #{tpu_custom_call.1} parent=5 // pred_region
        %s427 = ssub.s32 %s23, 1
        %p428 = scmp.lt.s32.totalorder %s28, 1
        %s429 = scalar_select %p428, %s28, 1
        %s430 = smul.addr %s429, 8
        %s431 = scalar_lea.vmem %s0, %s430
        %p432 = pneg %p49
        %p433 = pneg %p46
        %p434 = scmp.lt.s32.totalorder %s28, 1
        %s435 = scalar_select %p434, %s28, 1
        %s436 = scalar_lea.vmem %s1, %s435
        %p437 = pneg %p75
        %p438 = pneg %p72
        %p439 = pneg %p96
        %p440 = pneg %p93
        %p441 = pneg %p117
        %p442 = pneg %p114
        %p443 = pneg %p138
        %p444 = pneg %p135
        %p445 = pneg %p159
        %p446 = pneg %p156
        %p447 = pneg %p180
        %p448 = pneg %p177
        %p449 = pneg %p201
        %p450 = pneg %p198
        %p451 = pneg %p222
        %p452 = pneg %p219
        %p453 = pneg %p243
        %p454 = pneg %p240
        %p455 = pneg %p264
        %p456 = pneg %p261
        %p457 = pneg %p285
        %p458 = pneg %p282
        %p459 = pneg %p306
        %p460 = pneg %p303
        %p461 = pneg %p327
        %p462 = pneg %p324
        %p463 = pneg %p353
        %p464 = pneg %p350
        %s465 = sand.u32 %s340, 1
        %s466 = scalar_lea.sflag [#allocation5], %s465
        %s467 = sand.u32 %s340, 1
        %s468 = smul.addr %s467, 8
        %s469 = scalar_lea.vmem [#allocation4], %s468
        %p470 = scmp.lt.s32.totalorder %s28, 1
        %s471 = scalar_select %p470, %s28, 1
        %s472 = smul.addr %s471, 8
        %s473 = scalar_lea.vmem %s0, %s472
        %p474 = scmp.lt.s32.totalorder %s28, 1
        %s475 = scalar_select %p474, %s28, 1
        %s476 = scalar_lea.vmem %s1, %s475
        %v478 = vld [vmem:[%s473] sm:$0xff]
        %v479 = vpack.c.bf16 %v478, %v478
        %v480 = vld [vmem:[%s2] sm:$0xf]
        %v481 = vld [vmem:[%s2 + $0x4] sm:$0xf]
        %v482 = vld [vmem:[%s2 + $0x8] sm:$0xf]
        %v483 = vld [vmem:[%s2 + $0xc] sm:$0xf]
        %v484 = vld [vmem:[%s3] sm:$0x1]
        %v486 = vlaneseq
        %v487 = vshrl.u32 %v486, 7
        %v488 = vsub.s32 0, %v487
        %v489 = vrot.slane %v484, %v488
        %v495 = vunpack.c.l.b16 %v480
        %v496 = vunpack.c.l.b16 %v481
        %v497 = vunpack.c.l.b16 %v482
        %v498 = vunpack.c.l.b16 %v483
        %v499 = vpack.c.b16 %v496, %v495
        %v500 = vpack.c.b16 %v498, %v497
        %vm503 = vcmask 261120
        %v505 = vsel %vm503, %v479, 0
        %507 = vmatprep.subr.bf16.mxu0 0
        %508 = vmatpush1.bf16.msra.mxu0 %v499
        %509 = vmatprep.subr.bf16.mxu0 0
        %510 = vmatpush1.bf16.msra.mxu0 %v500
        %511 = vmatprep.subr.bf16.mxu0 0
        %512 = vmatpush1.bf16.msra.mxu0 0
        %513 = vmatprep.subr.bf16.mxu0 0
        %514 = vmatpush1.bf16.msra.mxu0 0
        %515 = vmatprep.subr.bf16.mxu0 0
        %516 = vmatpush1.bf16.msra.mxu0 0
        %517 = vmatprep.subr.bf16.mxu0 0
        %518 = vmatpush1.bf16.msra.mxu0 0
        %519 = vmatprep.subr.bf16.mxu0 0
        %520 = vmatpush1.bf16.msra.mxu0 0
        %521 = vmatprep.subr.bf16.mxu0 0
        %522 = vmatpush1.bf16.msra.mxu0 0
        %523 = vmatprep.subr.bf16.mxu0 0
        %524 = vmatpush1.bf16.msra.mxu0 0
        %525 = vmatprep.subr.bf16.mxu0 0
        %526 = vmatpush1.bf16.msra.mxu0 0
        %527 = vmatprep.subr.bf16.mxu0 0
        %528 = vmatpush1.bf16.msra.mxu0 0
        %529 = vmatprep.subr.bf16.mxu0 0
        %530 = vmatpush1.bf16.msra.mxu0 0
        %531 = vmatprep.subr.bf16.mxu0 0
        %532 = vmatpush1.bf16.msra.mxu0 0
        %533 = vmatprep.subr.bf16.mxu0 0
        %534 = vmatpush1.bf16.msra.mxu0 0
        %535 = vmatprep.subr.bf16.mxu0 0
        %536 = vmatpush1.bf16.msra.mxu0 0
        %537 = vmatprep.subr.bf16.mxu0 0
        %538 = vmatpush1.bf16.msra.mxu0 0
        %539 = vmatprep.mubr.bf16.mxu0 0
        %540 = vmatmul.mubr.bf16.gmra.mrb[0].mxu0 %v505
        %v541 = vpop.f32.mrb[0].mxu0
        %v542 = vadd.f32 %v489, %v541
        %v543 = vpop.f32.mrb[0].mxu0
        %v544 = vpop.f32.mrb[0].mxu0
        %v545 = vpop.f32.mrb[0].mxu0
        %546 = vdwg.mxu0
        %v547 = vpack.c.bf16 %v542, %v542
        %vm548 = vcmask 781312
        %549 = vst.msk [vmem:[#allocation2] sm:$0xf] %vm548, %v547
        %v550 = vld [vmem:[%s476] sm:$0x1]
        %v551 = vld [vmem:[%s473] sm:$0xff]
        %v553 = vlaneseq
        %v554 = vshrl.u32 %v553, 7
        %v555 = vsub.s32 0, %v554
        %v556 = vrot.slane %v550, %v555
        %v558 = vld [vmem:[#allocation2] sm:$0xf]
        %v559 = vld [vmem:[#allocation2] sm:$0xf]
        %v561 = vunpack.c.l.b16 %v559
        %v562 = vpack.c.b16 %v561, %v561
        %563 = vrot.lane.b32.xlu0 %v562, 96
        %v564 = vpop.permute.xlu0 %563
        %vm565 = vcmask 64512
        %v567 = vsel %vm565, %v558, 0
        %v570 = vsel %vm565, %v564, 0
        %572 = vmatprep.subr.bf16.mxu0 0
        %573 = vmatpush1.bf16.xpose.msra.mxu0 %v570
        %574 = vmatprep.subr.bf16.mxu0 0
        %575 = vmatpush1.bf16.xpose.msra.mxu0 0
        %576 = vmatprep.subr.bf16.mxu0 0
        %577 = vmatpush1.bf16.xpose.msra.mxu0 0
        %578 = vmatprep.subr.bf16.mxu0 0
        %579 = vmatpush1.bf16.xpose.msra.mxu0 0
        %580 = vmatprep.subr.bf16.mxu0 0
        %581 = vmatpush1.bf16.xpose.msra.mxu0 0
        %582 = vmatprep.subr.bf16.mxu0 0
        %583 = vmatpush1.bf16.xpose.msra.mxu0 0
        %584 = vmatprep.subr.bf16.mxu0 0
        %585 = vmatpush1.bf16.xpose.msra.mxu0 0
        %586 = vmatprep.subr.bf16.mxu0 0
        %587 = vmatpush1.bf16.xpose.msra.mxu0 0
        %588 = vmatprep.subr.bf16.mxu0 0
        %589 = vmatpush1.bf16.xpose.msra.mxu0 0
        %590 = vmatprep.subr.bf16.mxu0 0
        %591 = vmatpush1.bf16.xpose.msra.mxu0 0
        %592 = vmatprep.subr.bf16.mxu0 0
        %593 = vmatpush1.bf16.xpose.msra.mxu0 0
        %594 = vmatprep.subr.bf16.mxu0 0
        %595 = vmatpush1.bf16.xpose.msra.mxu0 0
        %596 = vmatprep.subr.bf16.mxu0 0
        %597 = vmatpush1.bf16.xpose.msra.mxu0 0
        %598 = vmatprep.subr.bf16.mxu0 0
        %599 = vmatpush1.bf16.xpose.msra.mxu0 0
        %600 = vmatprep.subr.bf16.mxu0 0
        %601 = vmatpush1.bf16.xpose.msra.mxu0 0
        %602 = vmatprep.subr.bf16.mxu0 0
        %603 = vmatpush1.bf16.xpose.msra.mxu0 0
        %604 = vmatprep.mubr.bf16.mxu0 0
        %605 = vmatmul.mubr.bf16.gmra.mrb[0].mxu0 %v567
        %v606 = vpop.f32.mrb[0].mxu0
        %v607 = vadd.f32 %v556, %v606
        %v608 = vpop.f32.mrb[0].mxu0
        %v609 = vpop.f32.mrb[0].mxu0
        %v610 = vpop.f32.mrb[0].mxu0
        %611 = vdwg.mxu0
        %v612 = vsel %vm565, %v607, -inf
        %613 = vmax.xlane.f32.xlu0 %v612
        %v614 = vpop.xlane.xlu0 %613
        %v615 = vsub.f32 %v607, %v614
        %v616 = vmul.f32 %v615, 1.442695
        %v617 = vpow.pop %v616
        %v618 = vsel %vm565, %v617, 0.0
        %619 = vadd.xlane.f32.xlu0 %v618
        %v620 = vpop.xlane.xlu0 %619
        %v621 = vrcp.pop %v620
        %v622 = vmul.f32 %v617, %v621
        %v623 = vpack.c.bf16 %v622, %v622
        %624 = vrot.lane.b32.xlu0 %v562, 64
        %v625 = vpop.permute.xlu0 %624
        %v627 = vsel %vm565, %v623, 0
        %vm629 = vcmask 1043456
        %v631 = vsel %vm629, %v625, 0
        %633 = vmatprep.subr.bf16.mxu0 0
        %634 = vmatpush1.bf16.msra.mxu0 %v631
        %635 = vmatprep.subr.bf16.mxu0 0
        %636 = vmatpush1.bf16.msra.mxu0 0
        %637 = vmatprep.subr.bf16.mxu0 0
        %638 = vmatpush1.bf16.msra.mxu0 0
        %639 = vmatprep.subr.bf16.mxu0 0
        %640 = vmatpush1.bf16.msra.mxu0 0
        %641 = vmatprep.subr.bf16.mxu0 0
        %642 = vmatpush1.bf16.msra.mxu0 0
        %643 = vmatprep.subr.bf16.mxu0 0
        %644 = vmatpush1.bf16.msra.mxu0 0
        %645 = vmatprep.subr.bf16.mxu0 0
        %646 = vmatpush1.bf16.msra.mxu0 0
        %647 = vmatprep.subr.bf16.mxu0 0
        %648 = vmatpush1.bf16.msra.mxu0 0
        %649 = vmatprep.subr.bf16.mxu0 0
        %650 = vmatpush1.bf16.msra.mxu0 0
        %651 = vmatprep.subr.bf16.mxu0 0
        %652 = vmatpush1.bf16.msra.mxu0 0
        %653 = vmatprep.subr.bf16.mxu0 0
        %654 = vmatpush1.bf16.msra.mxu0 0
        %655 = vmatprep.subr.bf16.mxu0 0
        %656 = vmatpush1.bf16.msra.mxu0 0
        %657 = vmatprep.subr.bf16.mxu0 0
        %658 = vmatpush1.bf16.msra.mxu0 0
        %659 = vmatprep.subr.bf16.mxu0 0
        %660 = vmatpush1.bf16.msra.mxu0 0
        %661 = vmatprep.subr.bf16.mxu0 0
        %662 = vmatpush1.bf16.msra.mxu0 0
        %663 = vmatprep.subr.bf16.mxu0 0
        %664 = vmatpush1.bf16.msra.mxu0 0
        %665 = vmatprep.mubr.bf16.mxu0 0
        %666 = vmatmul.mubr.bf16.gmra.mrb[0].mxu0 %v627
        %v667 = vpop.f32.mrb[0].mxu0
        %v668 = vadd.f32 0.0, %v667
        %v669 = vpop.f32.mrb[0].mxu0
        %v670 = vpop.f32.mrb[0].mxu0
        %v671 = vpop.f32.mrb[0].mxu0
        %672 = vdwg.mxu0
        %v674 = vunpack.c.l.b16 %v558
        %v675 = vpack.c.b16 %v674, %v674
        %676 = vrot.lane.b32.xlu0 %v675, 120
        %v677 = vpop.permute.xlu0 %676
        %678 = vrot.lane.b32.xlu0 %v562, 88
        %v679 = vpop.permute.xlu0 %678
        %v681 = vsel %vm565, %v677, 0
        %v684 = vsel %vm565, %v679, 0
        %686 = vmatprep.subr.bf16.mxu0 0
        %687 = vmatpush1.bf16.xpose.msra.mxu0 %v684
        %688 = vmatprep.subr.bf16.mxu0 0
        %689 = vmatpush1.bf16.xpose.msra.mxu0 0
        %690 = vmatprep.subr.bf16.mxu0 0
        %691 = vmatpush1.bf16.xpose.msra.mxu0 0
        %692 = vmatprep.subr.bf16.mxu0 0
        %693 = vmatpush1.bf16.xpose.msra.mxu0 0
        %694 = vmatprep.subr.bf16.mxu0 0
        %695 = vmatpush1.bf16.xpose.msra.mxu0 0
        %696 = vmatprep.subr.bf16.mxu0 0
        %697 = vmatpush1.bf16.xpose.msra.mxu0 0
        %698 = vmatprep.subr.bf16.mxu0 0
        %699 = vmatpush1.bf16.xpose.msra.mxu0 0
        %700 = vmatprep.subr.bf16.mxu0 0
        %701 = vmatpush1.bf16.xpose.msra.mxu0 0
        %702 = vmatprep.subr.bf16.mxu0 0
        %703 = vmatpush1.bf16.xpose.msra.mxu0 0
        %704 = vmatprep.subr.bf16.mxu0 0
        %705 = vmatpush1.bf16.xpose.msra.mxu0 0
        %706 = vmatprep.subr.bf16.mxu0 0
        %707 = vmatpush1.bf16.xpose.msra.mxu0 0
        %708 = vmatprep.subr.bf16.mxu0 0
        %709 = vmatpush1.bf16.xpose.msra.mxu0 0
        %710 = vmatprep.subr.bf16.mxu0 0
        %711 = vmatpush1.bf16.xpose.msra.mxu0 0
        %712 = vmatprep.subr.bf16.mxu0 0
        %713 = vmatpush1.bf16.xpose.msra.mxu0 0
        %714 = vmatprep.subr.bf16.mxu0 0
        %715 = vmatpush1.bf16.xpose.msra.mxu0 0
        %716 = vmatprep.subr.bf16.mxu0 0
        %717 = vmatpush1.bf16.xpose.msra.mxu0 0
        %718 = vmatprep.mubr.bf16.mxu0 0
        %719 = vmatmul.mubr.bf16.gmra.mrb[0].mxu0 %v681
        %v720 = vpop.f32.mrb[0].mxu0
        %v721 = vadd.f32 %v556, %v720
        %v722 = vpop.f32.mrb[0].mxu0
        %v723 = vpop.f32.mrb[0].mxu0
        %v724 = vpop.f32.mrb[0].mxu0
        %725 = vdwg.mxu0
        %v726 = vsel %vm565, %v721, -inf
        %727 = vmax.xlane.f32.xlu0 %v726
        %v728 = vpop.xlane.xlu0 %727
        %v729 = vsub.f32 %v721, %v728
        %v730 = vmul.f32 %v729, 1.442695
        %v731 = vpow.pop %v730
        %v732 = vsel %vm565, %v731, 0.0
        %733 = vadd.xlane.f32.xlu0 %v732
        %v734 = vpop.xlane.xlu0 %733
        %v735 = vrcp.pop %v734
        %v736 = vmul.f32 %v731, %v735
        %v737 = vpack.c.bf16 %v736, %v736
        %738 = vrot.lane.b32.xlu0 %v562, 56
        %v739 = vpop.permute.xlu0 %738
        %v741 = vsel %vm565, %v737, 0
        %v744 = vsel %vm629, %v739, 0
        %746 = vmatprep.subr.bf16.mxu0 0
        %747 = vmatpush1.bf16.msra.mxu0 %v744
        %748 = vmatprep.subr.bf16.mxu0 0
        %749 = vmatpush1.bf16.msra.mxu0 0
        %750 = vmatprep.subr.bf16.mxu0 0
        %751 = vmatpush1.bf16.msra.mxu0 0
        %752 = vmatprep.subr.bf16.mxu0 0
        %753 = vmatpush1.bf16.msra.mxu0 0
        %754 = vmatprep.subr.bf16.mxu0 0
        %755 = vmatpush1.bf16.msra.mxu0 0
        %756 = vmatprep.subr.bf16.mxu0 0
        %757 = vmatpush1.bf16.msra.mxu0 0
        %758 = vmatprep.subr.bf16.mxu0 0
        %759 = vmatpush1.bf16.msra.mxu0 0
        %760 = vmatprep.subr.bf16.mxu0 0
        %761 = vmatpush1.bf16.msra.mxu0 0
        %762 = vmatprep.subr.bf16.mxu0 0
        %763 = vmatpush1.bf16.msra.mxu0 0
        %764 = vmatprep.subr.bf16.mxu0 0
        %765 = vmatpush1.bf16.msra.mxu0 0
        %766 = vmatprep.subr.bf16.mxu0 0
        %767 = vmatpush1.bf16.msra.mxu0 0
        %768 = vmatprep.subr.bf16.mxu0 0
        %769 = vmatpush1.bf16.msra.mxu0 0
        %770 = vmatprep.subr.bf16.mxu0 0
        %771 = vmatpush1.bf16.msra.mxu0 0
        %772 = vmatprep.subr.bf16.mxu0 0
        %773 = vmatpush1.bf16.msra.mxu0 0
        %774 = vmatprep.subr.bf16.mxu0 0
        %775 = vmatpush1.bf16.msra.mxu0 0
        %776 = vmatprep.subr.bf16.mxu0 0
        %777 = vmatpush1.bf16.msra.mxu0 0
        %778 = vmatprep.mubr.bf16.mxu0 0
        %779 = vmatmul.mubr.bf16.gmra.mrb[0].mxu0 %v741
        %v780 = vpop.f32.mrb[0].mxu0
        %v781 = vadd.f32 0.0, %v780
        %v782 = vpop.f32.mrb[0].mxu0
        %v783 = vpop.f32.mrb[0].mxu0
        %v784 = vpop.f32.mrb[0].mxu0
        %785 = vdwg.mxu0
        %786 = vrot.lane.b32.xlu0 %v675, 112
        %v787 = vpop.permute.xlu0 %786
        %788 = vrot.lane.b32.xlu0 %v562, 80
        %v789 = vpop.permute.xlu0 %788
        %v791 = vsel %vm565, %v787, 0
        %v794 = vsel %vm565, %v789, 0
        %796 = vmatprep.subr.bf16.mxu0 0
        %797 = vmatpush1.bf16.xpose.msra.mxu0 %v794
        %798 = vmatprep.subr.bf16.mxu0 0
        %799 = vmatpush1.bf16.xpose.msra.mxu0 0
        %800 = vmatprep.subr.bf16.mxu0 0
        %801 = vmatpush1.bf16.xpose.msra.mxu0 0
        %802 = vmatprep.subr.bf16.mxu0 0
        %803 = vmatpush1.bf16.xpose.msra.mxu0 0
        %804 = vmatprep.subr.bf16.mxu0 0
        %805 = vmatpush1.bf16.xpose.msra.mxu0 0
        %806 = vmatprep.subr.bf16.mxu0 0
        %807 = vmatpush1.bf16.xpose.msra.mxu0 0
        %808 = vmatprep.subr.bf16.mxu0 0
        %809 = vmatpush1.bf16.xpose.msra.mxu0 0
        %810 = vmatprep.subr.bf16.mxu0 0
        %811 = vmatpush1.bf16.xpose.msra.mxu0 0
        %812 = vmatprep.subr.bf16.mxu0 0
        %813 = vmatpush1.bf16.xpose.msra.mxu0 0
        %814 = vmatprep.subr.bf16.mxu0 0
        %815 = vmatpush1.bf16.xpose.msra.mxu0 0
        %816 = vmatprep.subr.bf16.mxu0 0
        %817 = vmatpush1.bf16.xpose.msra.mxu0 0
        %818 = vmatprep.subr.bf16.mxu0 0
        %819 = vmatpush1.bf16.xpose.msra.mxu0 0
        %820 = vmatprep.subr.bf16.mxu0 0
        %821 = vmatpush1.bf16.xpose.msra.mxu0 0
        %822 = vmatprep.subr.bf16.mxu0 0
        %823 = vmatpush1.bf16.xpose.msra.mxu0 0
        %824 = vmatprep.subr.bf16.mxu0 0
        %825 = vmatpush1.bf16.xpose.msra.mxu0 0
        %826 = vmatprep.subr.bf16.mxu0 0
        %827 = vmatpush1.bf16.xpose.msra.mxu0 0
        %828 = vmatprep.mubr.bf16.mxu0 0
        %829 = vmatmul.mubr.bf16.gmra.mrb[0].mxu0 %v791
        %v830 = vpop.f32.mrb[0].mxu0
        %v831 = vadd.f32 %v556, %v830
        %v832 = vpop.f32.mrb[0].mxu0
        %v833 = vpop.f32.mrb[0].mxu0
        %v834 = vpop.f32.mrb[0].mxu0
        %835 = vdwg.mxu0
        %v836 = vsel %vm565, %v831, -inf
        %837 = vmax.xlane.f32.xlu0 %v836
        %v838 = vpop.xlane.xlu0 %837
        %v839 = vsub.f32 %v831, %v838
        %v840 = vmul.f32 %v839, 1.442695
        %v841 = vpow.pop %v840
        %v842 = vsel %vm565, %v841, 0.0
        %843 = vadd.xlane.f32.xlu0 %v842
        %v844 = vpop.xlane.xlu0 %843
        %v845 = vrcp.pop %v844
        %v846 = vmul.f32 %v841, %v845
        %v847 = vpack.c.bf16 %v846, %v846
        %848 = vrot.lane.b32.xlu0 %v562, 48
        %v849 = vpop.permute.xlu0 %848
        %v851 = vsel %vm565, %v847, 0
        %v854 = vsel %vm629, %v849, 0
        %856 = vmatprep.subr.bf16.mxu0 0
        %857 = vmatpush1.bf16.msra.mxu0 %v854
        %858 = vmatprep.subr.bf16.mxu0 0
        %859 = vmatpush1.bf16.msra.mxu0 0
        %860 = vmatprep.subr.bf16.mxu0 0
        %861 = vmatpush1.bf16.msra.mxu0 0
        %862 = vmatprep.subr.bf16.mxu0 0
        %863 = vmatpush1.bf16.msra.mxu0 0
        %864 = vmatprep.subr.bf16.mxu0 0
        %865 = vmatpush1.bf16.msra.mxu0 0
        %866 = vmatprep.subr.bf16.mxu0 0
        %867 = vmatpush1.bf16.msra.mxu0 0
        %868 = vmatprep.subr.bf16.mxu0 0
        %869 = vmatpush1.bf16.msra.mxu0 0
        %870 = vmatprep.subr.bf16.mxu0 0
        %871 = vmatpush1.bf16.msra.mxu0 0
        %872 = vmatprep.subr.bf16.mxu0 0
        %873 = vmatpush1.bf16.msra.mxu0 0
        %874 = vmatprep.subr.bf16.mxu0 0
        %875 = vmatpush1.bf16.msra.mxu0 0
        %876 = vmatprep.subr.bf16.mxu0 0
        %877 = vmatpush1.bf16.msra.mxu0 0
        %878 = vmatprep.subr.bf16.mxu0 0
        %879 = vmatpush1.bf16.msra.mxu0 0
        %880 = vmatprep.subr.bf16.mxu0 0
        %881 = vmatpush1.bf16.msra.mxu0 0
        %882 = vmatprep.subr.bf16.mxu0 0
        %883 = vmatpush1.bf16.msra.mxu0 0
        %884 = vmatprep.subr.bf16.mxu0 0
        %885 = vmatpush1.bf16.msra.mxu0 0
        %886 = vmatprep.subr.bf16.mxu0 0
        %887 = vmatpush1.bf16.msra.mxu0 0
        %888 = vmatprep.mubr.bf16.mxu0 0
        %889 = vmatmul.mubr.bf16.gmra.mrb[0].mxu0 %v851
        %v890 = vpop.f32.mrb[0].mxu0
        %v891 = vadd.f32 0.0, %v890
        %v892 = vpop.f32.mrb[0].mxu0
        %v893 = vpop.f32.mrb[0].mxu0
        %v894 = vpop.f32.mrb[0].mxu0
        %895 = vdwg.mxu0
        %896 = vrot.lane.b32.xlu0 %v675, 104
        %v897 = vpop.permute.xlu0 %896
        %898 = vrot.lane.b32.xlu0 %v562, 72
        %v899 = vpop.permute.xlu0 %898
        %v901 = vsel %vm565, %v897, 0
        %v904 = vsel %vm565, %v899, 0
        %906 = vmatprep.subr.bf16.mxu0 0
        %907 = vmatpush1.bf16.xpose.msra.mxu0 %v904
        %908 = vmatprep.subr.bf16.mxu0 0
        %909 = vmatpush1.bf16.xpose.msra.mxu0 0
        %910 = vmatprep.subr.bf16.mxu0 0
        %911 = vmatpush1.bf16.xpose.msra.mxu0 0
        %912 = vmatprep.subr.bf16.mxu0 0
        %913 = vmatpush1.bf16.xpose.msra.mxu0 0
        %914 = vmatprep.subr.bf16.mxu0 0
        %915 = vmatpush1.bf16.xpose.msra.mxu0 0
        %916 = vmatprep.subr.bf16.mxu0 0
        %917 = vmatpush1.bf16.xpose.msra.mxu0 0
        %918 = vmatprep.subr.bf16.mxu0 0
        %919 = vmatpush1.bf16.xpose.msra.mxu0 0
        %920 = vmatprep.subr.bf16.mxu0 0
        %921 = vmatpush1.bf16.xpose.msra.mxu0 0
        %922 = vmatprep.subr.bf16.mxu0 0
        %923 = vmatpush1.bf16.xpose.msra.mxu0 0
        %924 = vmatprep.subr.bf16.mxu0 0
        %925 = vmatpush1.bf16.xpose.msra.mxu0 0
        %926 = vmatprep.subr.bf16.mxu0 0
        %927 = vmatpush1.bf16.xpose.msra.mxu0 0
        %928 = vmatprep.subr.bf16.mxu0 0
        %929 = vmatpush1.bf16.xpose.msra.mxu0 0
        %930 = vmatprep.subr.bf16.mxu0 0
        %931 = vmatpush1.bf16.xpose.msra.mxu0 0
        %932 = vmatprep.subr.bf16.mxu0 0
        %933 = vmatpush1.bf16.xpose.msra.mxu0 0
        %934 = vmatprep.subr.bf16.mxu0 0
        %935 = vmatpush1.bf16.xpose.msra.mxu0 0
        %936 = vmatprep.subr.bf16.mxu0 0
        %937 = vmatpush1.bf16.xpose.msra.mxu0 0
        %938 = vmatprep.mubr.bf16.mxu0 0
        %939 = vmatmul.mubr.bf16.gmra.mrb[0].mxu0 %v901
        %v940 = vpop.f32.mrb[0].mxu0
        %v941 = vadd.f32 %v556, %v940
        %v942 = vpop.f32.mrb[0].mxu0
        %v943 = vpop.f32.mrb[0].mxu0
        %v944 = vpop.f32.mrb[0].mxu0
        %945 = vdwg.mxu0
        %v946 = vsel %vm565, %v941, -inf
        %947 = vmax.xlane.f32.xlu0 %v946
        %v948 = vpop.xlane.xlu0 %947
        %v949 = vsub.f32 %v941, %v948
        %v950 = vmul.f32 %v949, 1.442695
        %v951 = vpow.pop %v950
        %v952 = vsel %vm565, %v951, 0.0
        %953 = vadd.xlane.f32.xlu0 %v952
        %v954 = vpop.xlane.xlu0 %953
        %v955 = vrcp.pop %v954
        %v956 = vmul.f32 %v951, %v955
        %v957 = vpack.c.bf16 %v956, %v956
        %958 = vrot.lane.b32.xlu0 %v562, 40
        %v959 = vpop.permute.xlu0 %958
        %v961 = vsel %vm565, %v957, 0
        %v964 = vsel %vm629, %v959, 0
        %966 = vmatprep.subr.bf16.mxu0 0
        %967 = vmatpush1.bf16.msra.mxu0 %v964
        %968 = vmatprep.subr.bf16.mxu0 0
        %969 = vmatpush1.bf16.msra.mxu0 0
        %970 = vmatprep.subr.bf16.mxu0 0
        %971 = vmatpush1.bf16.msra.mxu0 0
        %972 = vmatprep.subr.bf16.mxu0 0
        %973 = vmatpush1.bf16.msra.mxu0 0
        %974 = vmatprep.subr.bf16.mxu0 0
        %975 = vmatpush1.bf16.msra.mxu0 0
        %976 = vmatprep.subr.bf16.mxu0 0
        %977 = vmatpush1.bf16.msra.mxu0 0
        %978 = vmatprep.subr.bf16.mxu0 0
        %979 = vmatpush1.bf16.msra.mxu0 0
        %980 = vmatprep.subr.bf16.mxu0 0
        %981 = vmatpush1.bf16.msra.mxu0 0
        %982 = vmatprep.subr.bf16.mxu0 0
        %983 = vmatpush1.bf16.msra.mxu0 0
        %984 = vmatprep.subr.bf16.mxu0 0
        %985 = vmatpush1.bf16.msra.mxu0 0
        %986 = vmatprep.subr.bf16.mxu0 0
        %987 = vmatpush1.bf16.msra.mxu0 0
        %988 = vmatprep.subr.bf16.mxu0 0
        %989 = vmatpush1.bf16.msra.mxu0 0
        %990 = vmatprep.subr.bf16.mxu0 0
        %991 = vmatpush1.bf16.msra.mxu0 0
        %992 = vmatprep.subr.bf16.mxu0 0
        %993 = vmatpush1.bf16.msra.mxu0 0
        %994 = vmatprep.subr.bf16.mxu0 0
        %995 = vmatpush1.bf16.msra.mxu0 0
        %996 = vmatprep.subr.bf16.mxu0 0
        %997 = vmatpush1.bf16.msra.mxu0 0
        %998 = vmatprep.mubr.bf16.mxu0 0
        %999 = vmatmul.mubr.bf16.gmra.mrb[0].mxu0 %v961
        %v1000 = vpop.f32.mrb[0].mxu0
        %v1001 = vadd.f32 0.0, %v1000
        %v1002 = vpop.f32.mrb[0].mxu0
        %v1003 = vpop.f32.mrb[0].mxu0
        %v1004 = vpop.f32.mrb[0].mxu0
        %1005 = vdwg.mxu0
        %1007 = vrot.lane.b32.xlu0 %v781, 8
        %v1008 = vpop.permute.xlu0 %1007
        %1011 = vrot.lane.b32.xlu0 %v891, 16
        %v1012 = vpop.permute.xlu0 %1011
        %1015 = vrot.lane.b32.xlu0 %v1001, 24
        %v1016 = vpop.permute.xlu0 %1015
        %v1018 = vsel %vm565, %v668, %v1008
        %vm1019 = vcmask 130048
        %v1020 = vsel %vm1019, %v1018, %v1012
        %vm1021 = vcmask 195584
        %v1022 = vsel %vm1021, %v1020, %v1016
        %v1023 = vpack.c.bf16 %v1022, %v1022
        %vm1024 = vcmask 257024
        %1025 = vst.msk [vmem:[#allocation3] sm:$0xf] %vm1024, %v1023
        %v1026 = vld [vmem:[#allocation3] sm:$0xf]
        %v1027 = vld [vmem:[%s4] sm:$0xf]
        %v1028 = vld [vmem:[%s4 + $0x4] sm:$0xf]
        %v1029 = vld [vmem:[%s4 + $0x8] sm:$0xf]
        %v1030 = vld [vmem:[%s4 + $0xc] sm:$0xf]
        %v1031 = vld [vmem:[%s5] sm:$0x1]
        %v1033 = vlaneseq
        %v1034 = vshrl.u32 %v1033, 7
        %v1035 = vsub.s32 0, %v1034
        %v1036 = vrot.slane %v1031, %v1035
        %v1042 = vunpack.c.l.b16 %v1027
        %v1043 = vunpack.c.l.b16 %v1028
        %v1044 = vunpack.c.l.b16 %v1029
        %v1045 = vunpack.c.l.b16 %v1030
        %v1046 = vpack.c.b16 %v1043, %v1042
        %v1047 = vpack.c.b16 %v1045, %v1044
        %v1051 = vsel %vm503, %v1026, 0
        %1053 = vmatprep.subr.bf16.mxu0 0
        %1054 = vmatpush1.bf16.msra.mxu0 %v1046
        %1055 = vmatprep.subr.bf16.mxu0 0
        %1056 = vmatpush1.bf16.msra.mxu0 %v1047
        %1057 = vmatprep.subr.bf16.mxu0 0
        %1058 = vmatpush1.bf16.msra.mxu0 0
        %1059 = vmatprep.subr.bf16.mxu0 0
        %1060 = vmatpush1.bf16.msra.mxu0 0
        %1061 = vmatprep.subr.bf16.mxu0 0
        %1062 = vmatpush1.bf16.msra.mxu0 0
        %1063 = vmatprep.subr.bf16.mxu0 0
        %1064 = vmatpush1.bf16.msra.mxu0 0
        %1065 = vmatprep.subr.bf16.mxu0 0
        %1066 = vmatpush1.bf16.msra.mxu0 0
        %1067 = vmatprep.subr.bf16.mxu0 0
        %1068 = vmatpush1.bf16.msra.mxu0 0
        %1069 = vmatprep.subr.bf16.mxu0 0
        %1070 = vmatpush1.bf16.msra.mxu0 0
        %1071 = vmatprep.subr.bf16.mxu0 0
        %1072 = vmatpush1.bf16.msra.mxu0 0
        %1073 = vmatprep.subr.bf16.mxu0 0
        %1074 = vmatpush1.bf16.msra.mxu0 0
        %1075 = vmatprep.subr.bf16.mxu0 0
        %1076 = vmatpush1.bf16.msra.mxu0 0
        %1077 = vmatprep.subr.bf16.mxu0 0
        %1078 = vmatpush1.bf16.msra.mxu0 0
        %1079 = vmatprep.subr.bf16.mxu0 0
        %1080 = vmatpush1.bf16.msra.mxu0 0
        %1081 = vmatprep.subr.bf16.mxu0 0
        %1082 = vmatpush1.bf16.msra.mxu0 0
        %1083 = vmatprep.subr.bf16.mxu0 0
        %1084 = vmatpush1.bf16.msra.mxu0 0
        %1085 = vmatprep.mubr.bf16.mxu0 0
        %1086 = vmatmul.mubr.bf16.gmra.mrb[0].mxu0 %v1051
        %v1087 = vpop.f32.mrb[0].mxu0
        %v1088 = vadd.f32 %v1036, %v1087
        %v1089 = vpop.f32.mrb[0].mxu0
        %v1090 = vpop.f32.mrb[0].mxu0
        %v1091 = vpop.f32.mrb[0].mxu0
        %1092 = vdwg.mxu0
        %v1093 = vadd.f32 %v551, %v1088
        %v1094 = vld [vmem:[%s6] sm:$0x1]
        %v1095 = vld [vmem:[%s7] sm:$0x1]
        %v1096 = vsel %vm503, %v1093, 0.0
        %1097 = vadd.xlane.f32.xlu0 %v1096
        %v1098 = vpop.xlane.xlu0 %1097
        %v1099 = vrcp.pop 32.0
        %v1100 = vmul.f32 %v1098, %v1099
        %v1101 = vsub.f32 %v1093, %v1100
        %v1102 = vmul.f32 %v1101, %v1101
        %v1103 = vsel %vm503, %v1102, 0.0
        %1104 = vadd.xlane.f32.xlu0 %v1103
        %v1105 = vpop.xlane.xlu0 %1104
        %v1106 = vmul.f32 %v1105, %v1099
        %v1107 = vadd.f32 %v1106, 1e-05
        %v1108 = vrsqrt.pop %v1107
        %v1109 = vmul.f32 %v1101, %v1108
        %v1111 = vlaneseq
        %v1112 = vshrl.u32 %v1111, 7
        %v1113 = vsub.s32 0, %v1112
        %v1114 = vrot.slane %v1094, %v1113
        %v1116 = vmul.f32 %v1109, %v1114
        %v1118 = vlaneseq
        %v1119 = vshrl.u32 %v1118, 7
        %v1120 = vsub.s32 0, %v1119
        %v1121 = vrot.slane %v1095, %v1120
        %v1123 = vadd.f32 %v1116, %v1121
        %v1124 = vpack.c.bf16 %v1123, %v1123
        %v1125 = vld [vmem:[%s8] sm:$0xf]
        %v1126 = vld [vmem:[%s8 + $0x4] sm:$0xf]
        %v1127 = vld [vmem:[%s8 + $0x8] sm:$0xf]
        %v1128 = vld [vmem:[%s8 + $0xc] sm:$0xf]
        %v1129 = vld [vmem:[%s9] sm:$0x1]
        %v1131 = vlaneseq
        %v1132 = vshrl.u32 %v1131, 7
        %v1133 = vsub.s32 0, %v1132
        %v1134 = vrot.slane %v1129, %v1133
        %v1140 = vunpack.c.l.b16 %v1125
        %v1141 = vunpack.c.l.b16 %v1126
        %v1142 = vunpack.c.l.b16 %v1127
        %v1143 = vunpack.c.l.b16 %v1128
        %v1144 = vpack.c.b16 %v1141, %v1140
        %v1145 = vpack.c.b16 %v1143, %v1142
        %v1149 = vsel %vm503, %v1124, 0
        %1151 = vmatprep.subr.bf16.mxu0 0
        %1152 = vmatpush1.bf16.msra.mxu0 %v1144
        %1153 = vmatprep.subr.bf16.mxu0 0
        %1154 = vmatpush1.bf16.msra.mxu0 %v1145
        %1155 = vmatprep.subr.bf16.mxu0 0
        %1156 = vmatpush1.bf16.msra.mxu0 0
        %1157 = vmatprep.subr.bf16.mxu0 0
        %1158 = vmatpush1.bf16.msra.mxu0 0
        %1159 = vmatprep.subr.bf16.mxu0 0
        %1160 = vmatpush1.bf16.msra.mxu0 0
        %1161 = vmatprep.subr.bf16.mxu0 0
        %1162 = vmatpush1.bf16.msra.mxu0 0
        %1163 = vmatprep.subr.bf16.mxu0 0
        %1164 = vmatpush1.bf16.msra.mxu0 0
        %1165 = vmatprep.subr.bf16.mxu0 0
        %1166 = vmatpush1.bf16.msra.mxu0 0
        %1167 = vmatprep.subr.bf16.mxu0 0
        %1168 = vmatpush1.bf16.msra.mxu0 0
        %1169 = vmatprep.subr.bf16.mxu0 0
        %1170 = vmatpush1.bf16.msra.mxu0 0
        %1171 = vmatprep.subr.bf16.mxu0 0
        %1172 = vmatpush1.bf16.msra.mxu0 0
        %1173 = vmatprep.subr.bf16.mxu0 0
        %1174 = vmatpush1.bf16.msra.mxu0 0
        %1175 = vmatprep.subr.bf16.mxu0 0
        %1176 = vmatpush1.bf16.msra.mxu0 0
        %1177 = vmatprep.subr.bf16.mxu0 0
        %1178 = vmatpush1.bf16.msra.mxu0 0
        %1179 = vmatprep.subr.bf16.mxu0 0
        %1180 = vmatpush1.bf16.msra.mxu0 0
        %1181 = vmatprep.subr.bf16.mxu0 0
        %1182 = vmatpush1.bf16.msra.mxu0 0
        %1183 = vmatprep.mubr.bf16.mxu0 0
        %1184 = vmatmul.mubr.bf16.gmra.mrb[0].mxu0 %v1149
        %v1185 = vpop.f32.mrb[0].mxu0
        %v1186 = vadd.f32 %v1134, %v1185
        %v1187 = vpop.f32.mrb[0].mxu0
        %v1188 = vpop.f32.mrb[0].mxu0
        %v1189 = vpop.f32.mrb[0].mxu0
        %1190 = vdwg.mxu0
        %v1191 = vmul.f32 %v1186, 0.5
        %v1192 = vmul.f32 %v1186, 0.70710677
        %vm1193 = vcmp.ge.f32.partialorder %v1192, 0.0
        %v1194 = vsel %vm1193, 1.0, -1.0
        %v1195 = vand.u32 2147483647, %v1192
        %v1196 = vmul.f32 %v1195, 0.3275911
        %v1197 = vadd.f32 %v1196, 1.0
        %v1198 = vrcp.pop %v1197
        %v1199 = vmul.f32 1.0, %v1198
        %v1200 = vmul.f32 %v1199, 1.0614054
        %v1201 = vadd.f32 %v1200, -1.4531521
        %v1202 = vmul.f32 %v1201, %v1199
        %v1203 = vadd.f32 %v1202, 1.4214138
        %v1204 = vmul.f32 %v1203, %v1199
        %v1205 = vadd.f32 %v1204, -0.28449672
        %v1206 = vmul.f32 %v1205, %v1199
        %v1207 = vadd.f32 %v1206, 0.2548296
        %v1208 = vmul.f32 %v1207, %v1199
        %v1209 = vmul.f32 %v1195, %v1195
        %v1210 = vsub.f32 0.0, %v1209
        %v1211 = vmul.f32 %v1210, 1.442695
        %v1212 = vpow.pop %v1211
        %v1213 = vmul.f32 %v1208, %v1212
        %v1214 = vsub.f32 1.0, %v1213
        %v1215 = vmul.f32 %v1194, %v1214
        %v1216 = vadd.f32 %v1215, 1.0
        %v1217 = vmul.f32 %v1191, %v1216
        %v1218 = vpack.c.bf16 %v1217, %v1217
        %v1219 = vld [vmem:[%s10] sm:$0xf]
        %v1220 = vld [vmem:[%s10 + $0x4] sm:$0xf]
        %v1221 = vld [vmem:[%s10 + $0x8] sm:$0xf]
        %v1222 = vld [vmem:[%s10 + $0xc] sm:$0xf]
        %v1223 = vld [vmem:[%s10 + $0x10] sm:$0xf]
        %v1224 = vld [vmem:[%s10 + $0x14] sm:$0xf]
        %v1225 = vld [vmem:[%s10 + $0x18] sm:$0xf]
        %v1226 = vld [vmem:[%s10 + $0x1c] sm:$0xf]
        %v1227 = vld [vmem:[%s10 + $0x20] sm:$0xf]
        %v1228 = vld [vmem:[%s10 + $0x24] sm:$0xf]
        %v1229 = vld [vmem:[%s10 + $0x28] sm:$0xf]
        %v1230 = vld [vmem:[%s10 + $0x2c] sm:$0xf]
        %v1231 = vld [vmem:[%s10 + $0x30] sm:$0xf]
        %v1232 = vld [vmem:[%s10 + $0x34] sm:$0xf]
        %v1233 = vld [vmem:[%s10 + $0x38] sm:$0xf]
        %v1234 = vld [vmem:[%s10 + $0x3c] sm:$0xf]
        %v1235 = vld [vmem:[%s11] sm:$0x1]
        %v1237 = vlaneseq
        %v1238 = vshrl.u32 %v1237, 7
        %v1239 = vsub.s32 0, %v1238
        %v1240 = vrot.slane %v1235, %v1239
        %v1258 = vunpack.c.l.b16 %v1219
        %v1259 = vunpack.c.l.b16 %v1220
        %v1260 = vunpack.c.l.b16 %v1221
        %v1261 = vunpack.c.l.b16 %v1222
        %v1262 = vunpack.c.l.b16 %v1223
        %v1263 = vunpack.c.l.b16 %v1224
        %v1264 = vunpack.c.l.b16 %v1225
        %v1265 = vunpack.c.l.b16 %v1226
        %v1266 = vunpack.c.l.b16 %v1227
        %v1267 = vunpack.c.l.b16 %v1228
        %v1268 = vunpack.c.l.b16 %v1229
        %v1269 = vunpack.c.l.b16 %v1230
        %v1270 = vunpack.c.l.b16 %v1231
        %v1271 = vunpack.c.l.b16 %v1232
        %v1272 = vunpack.c.l.b16 %v1233
        %v1273 = vunpack.c.l.b16 %v1234
        %v1274 = vpack.c.b16 %v1259, %v1258
        %v1275 = vpack.c.b16 %v1261, %v1260
        %v1276 = vpack.c.b16 %v1263, %v1262
        %v1277 = vpack.c.b16 %v1265, %v1264
        %v1278 = vpack.c.b16 %v1267, %v1266
        %v1279 = vpack.c.b16 %v1269, %v1268
        %v1280 = vpack.c.b16 %v1271, %v1270
        %v1281 = vpack.c.b16 %v1273, %v1272
        %1290 = vmatprep.subr.bf16.mxu0 0
        %1291 = vmatpush1.bf16.msra.mxu0 %v1274
        %1292 = vmatprep.subr.bf16.mxu0 0
        %1293 = vmatpush1.bf16.msra.mxu0 %v1275
        %1294 = vmatprep.subr.bf16.mxu0 0
        %1295 = vmatpush1.bf16.msra.mxu0 %v1276
        %1296 = vmatprep.subr.bf16.mxu0 0
        %1297 = vmatpush1.bf16.msra.mxu0 %v1277
        %1298 = vmatprep.subr.bf16.mxu0 0
        %1299 = vmatpush1.bf16.msra.mxu0 %v1278
        %1300 = vmatprep.subr.bf16.mxu0 0
        %1301 = vmatpush1.bf16.msra.mxu0 %v1279
        %1302 = vmatprep.subr.bf16.mxu0 0
        %1303 = vmatpush1.bf16.msra.mxu0 %v1280
        %1304 = vmatprep.subr.bf16.mxu0 0
        %1305 = vmatpush1.bf16.msra.mxu0 %v1281
        %1306 = vmatprep.subr.bf16.mxu0 0
        %1307 = vmatpush1.bf16.msra.mxu0 0
        %1308 = vmatprep.subr.bf16.mxu0 0
        %1309 = vmatpush1.bf16.msra.mxu0 0
        %1310 = vmatprep.subr.bf16.mxu0 0
        %1311 = vmatpush1.bf16.msra.mxu0 0
        %1312 = vmatprep.subr.bf16.mxu0 0
        %1313 = vmatpush1.bf16.msra.mxu0 0
        %1314 = vmatprep.subr.bf16.mxu0 0
        %1315 = vmatpush1.bf16.msra.mxu0 0
        %1316 = vmatprep.subr.bf16.mxu0 0
        %1317 = vmatpush1.bf16.msra.mxu0 0
        %1318 = vmatprep.subr.bf16.mxu0 0
        %1319 = vmatpush1.bf16.msra.mxu0 0
        %1320 = vmatprep.subr.bf16.mxu0 0
        %1321 = vmatpush1.bf16.msra.mxu0 0
        %1322 = vmatprep.mubr.bf16.mxu0 0
        %1323 = vmatmul.mubr.bf16.gmra.mrb[0].mxu0 %v1218
        %v1324 = vpop.f32.mrb[0].mxu0
        %v1325 = vadd.f32 %v1240, %v1324
        %v1326 = vpop.f32.mrb[0].mxu0
        %v1327 = vpop.f32.mrb[0].mxu0
        %v1328 = vpop.f32.mrb[0].mxu0
        %1329 = vdwg.mxu0
        %v1330 = vadd.f32 %v1123, %v1325
        %v1331 = vld [vmem:[%s12] sm:$0x1]
        %v1332 = vld [vmem:[%s13] sm:$0x1]
        %v1333 = vsel %vm503, %v1330, 0.0
        %1334 = vadd.xlane.f32.xlu0 %v1333
        %v1335 = vpop.xlane.xlu0 %1334
        %v1336 = vmul.f32 %v1335, %v1099
        %v1337 = vsub.f32 %v1330, %v1336
        %v1338 = vmul.f32 %v1337, %v1337
        %v1339 = vsel %vm503, %v1338, 0.0
        %1340 = vadd.xlane.f32.xlu0 %v1339
        %v1341 = vpop.xlane.xlu0 %1340
        %v1342 = vmul.f32 %v1341, %v1099
        %v1343 = vadd.f32 %v1342, 1e-05
        %v1344 = vrsqrt.pop %v1343
        %v1345 = vmul.f32 %v1337, %v1344
        %v1347 = vlaneseq
        %v1348 = vshrl.u32 %v1347, 7
        %v1349 = vsub.s32 0, %v1348
        %v1350 = vrot.slane %v1331, %v1349
        %v1352 = vmul.f32 %v1345, %v1350
        %v1354 = vlaneseq
        %v1355 = vshrl.u32 %v1354, 7
        %v1356 = vsub.s32 0, %v1355
        %v1357 = vrot.slane %v1332, %v1356
        %v1359 = vadd.f32 %v1352, %v1357
        %1360 = vst.msk [vmem:[%s469] sm:$0xff] %vm503, %v1359
        %s1361 = sand.u32 %s340, 1
        %s1362 = scalar_lea.sflag [#allocation5], %s1361
        %s1363 = sand.u32 %s340, 1
        %s1364 = smul.addr %s1363, 8
        %s1365 = scalar_lea.vmem [#allocation4], %s1364
        // Predicated region
        $region77: #{tpu_custom_call.1} parent=75 // pred_check
          %p1366 = pneg %p350
        $region78: #{tpu_custom_call.1} parent=75 // pred_check_branch
          %1368 = sbr.rel (%p1366) target = $region80
        $region79: #{tpu_custom_call.1} parent=75 // pred_region
          %s1370 = ssub.s32 128, 128
          %1371 = vsyncadd %s1362, %s1370
          %s1372 = smul.addr %s28, 128
          %s1373 = scalar_lea.hbm %s14, %s1372
          %s1375 = sshll.u32 %s1365, 4
          %s1376 = int_to_ptr.vmem [resolvable:$true] %s1375
          %1378 = dma.vmem_to_hbm [thread:$0]  %s1376, 128, %s1373, %s1362
        $region80: #{tpu_custom_call.1} parent=75 // pred_fallthru
          _
      $region76: #{tpu_custom_call.1} parent=5 // pred_fallthru
        _
      %p1379 = scmp.le.s32.totalorder 2, %s23
      // Predicated region
      $region81: #{tpu_custom_call.1} parent=5 // pred_check
        %p1380 = pneg %p1379
      $region82: #{tpu_custom_call.1} parent=5 // pred_check_branch
        %1382 = sbr.rel (%p1380) target = $region84
      $region83: #{tpu_custom_call.1} parent=5 // pred_region
        %s1383 = ssub.s32 %s23, 2
        // Predicated region
        $region85: #{tpu_custom_call.1} parent=83 // pred_check
          %p1384 = pneg %p356
        $region86: #{tpu_custom_call.1} parent=83 // pred_check_branch
          %1386 = sbr.rel (%p1384) target = $region88
        $region87: #{tpu_custom_call.1} parent=83 // pred_region
          %s1387 = sand.u32 %s341, 1
          %s1388 = scalar_lea.sflag [#allocation5], %s1387
          %s1389 = sand.u32 %s341, 1
          %s1390 = smul.addr %s1389, 8
          %s1391 = scalar_lea.vmem [#allocation4], %s1390
          %1392 = dma.done %s1388, 128
        $region88: #{tpu_custom_call.1} parent=83 // pred_fallthru
          _
      $region84: #{tpu_custom_call.1} parent=5 // pred_fallthru
        _
    $region6: #{tpu_custom_call.1} parent=1 // loop_footer
      %s27 = sadd.s32 1, %s23
    $region7: #{tpu_custom_call.1} parent=1 // loop_footer_branch
      %22 = sbr.rel target = $region3
    $region8: #{tpu_custom_call.1} parent=1 // loop_exit
      _
    %1393 = vsyncpa [#allocation5], 1
    %s1394 = scalar_lea.sflag [#allocation5], 1
    %1395 = vsyncpa %s1394, 1

</llo_original>
